<compile_context>
chip_gen: v6e
topology: v6e:2x2x1
jax: 0.10.0
libtpu: 0.0.40
codegen_flags: <defaults>
</compile_context>

<pallas_src>
import jax
import jax.numpy as jnp
from jax import lax
from jax.experimental import pallas as pl
from jax.experimental.pallas import tpu as pltpu


def _softplus(x):
    # Numerically-stable softplus (matches F.softplus, beta=1).
    return jnp.maximum(x, 0.0) + jnp.log1p(jnp.exp(-jnp.abs(x)))


def _round_up(n, m):
    return ((n + m - 1) // m) * m


def _cdiv(a, b):
    return -(-a // b)


# ----------------------------------------------------------------------------
# Fused kernel factory.
# ----------------------------------------------------------------------------
def _make_kernel(*, n_pi, n_k, act_dim, obs_dim, h0_pi, local, fuse0, squash,
                 eps, cdt, approx):
    f32 = jnp.float32
    n_k_hid = max(n_k - 2, 0) if (local and n_k >= 2) else 0

    def _c(a):  # cast to the MXU operand dtype only right before a dot
        return a if a.dtype == cdt else a.astype(cdt)

    def kernel(*refs):
        out_ref = refs[-1]
        it = iter(refs[:-1])
        x = next(it)[...].astype(f32)                      # (TB, obs)
        fwd_w = [next(it) for _ in range(n_pi)]            # forward weights (cdt)
        fwd_b = [next(it) for _ in range(n_pi)]            # forward biases (f32)
        w0_pi_ref = next(it) if fuse0 else None            # un-fused pi layer-0 W for the sweep
        if local:
            k_hid_w = [next(it) for _ in range(n_k_hid)]
            k_last_w = next(it)                            # (1, Hk_last) row
            k_hid_b = [next(it) for _ in range(n_k_hid)]
            k_last_b = next(it)                            # (1, 1)
        else:
            k_sp_ref = next(it)                            # (1, 1) softplus(K) from host
        if squash:
            scale_ref = next(it)                           # (act_dim, 1)
            shift_ref = next(it)                           # (act_dim, 1)

        tb = x.shape[0]
        xc = _c(x)

        # ---- layer 0 (pi, optionally fused with the Lips-K first layer: one wide MXU pass)
        h0 = jnp.tanh(jnp.dot(xc, fwd_w[0][...], preferred_element_type=f32)
                      + fwd_b[0][...])
        if fuse0:
            h, hk = h0[:, :h0_pi], h0[:, h0_pi:]
        else:
            h, hk = h0, None
        ds = [1.0 - h * h]                                 # tanh' masks (f32)

        # ---- remaining pi hidden layers
        for i in range(1, n_pi - 1):
            h = jnp.tanh(jnp.dot(_c(h), fwd_w[i][...], preferred_element_type=f32)
                         + fwd_b[i][...])
            ds.append(1.0 - h * h)

        # ---- pi output layer, computed TRANSPOSED -> (act_dim, TB) (lane-dense epilogue)
        w_last = fwd_w[n_pi - 1][...]                      # (act_dim, H_last), cdt
        f_out_t = lax.dot_general(w_last, _c(h), (((1,), (1,)), ((), ())),
                                  preferred_element_type=f32) + fwd_b[n_pi - 1][...]

        # ---- per-sample ||Jacobian||_F: all act_dim reverse sweeps STACKED into one
        #      (act_dim*TB, H) matmul per layer (fewer MXU pushes / result pops).
        w_last_f = w_last.astype(f32)
        seeds = [w_last_f[k:k + 1, :] * ds[-1] for k in range(act_dim)]
        G = seeds[0] if act_dim == 1 else jnp.concatenate(seeds, axis=0)
        for j in range(n_pi - 2, 0, -1):
            G = lax.dot_general(_c(G), fwd_w[j][...], (((1,), (1,)), ((), ())),
                                preferred_element_type=f32)
            dj = ds[j - 1]
            G = G * (dj if act_dim == 1 else jnp.concatenate([dj] * act_dim, axis=0))
        w0s = w0_pi_ref[...] if fuse0 else fwd_w[0][...]
        G = lax.dot_general(_c(G), w0s, (((1,), (1,)), ((), ())),
                            preferred_element_type=f32)    # (act_dim*TB, obs)
        gsq = G * G                                        # f32 accumulation
        # Lane-dense (1, act_dim*TB) row of per-sample sums via a single M=1 MXU pass
        # (avoids a lane-sparse XLU reduce + a column transpose).
        nsq = lax.dot_general(jnp.ones((1, obs_dim), f32), gsq,
                              (((1,), (1,)), ((), ())), preferred_element_type=f32)
        norm_sq = nsq[:, :tb]
        for k in range(1, act_dim):
            norm_sq = norm_sq + nsq[:, k * tb:(k + 1) * tb]
        inv_t = pl.reciprocal(jnp.sqrt(norm_sq) + eps, approx=approx)   # (1, TB)

        # ---- Lips K head -> (1, TB) row (lane-dense softplus on the EUP)
        if local:
            if n_k == 1:
                k_in = xc
            else:
                for i in range(n_k_hid):
                    hk = jnp.tanh(jnp.dot(_c(hk), k_hid_w[i][...],
                                          preferred_element_type=f32) + k_hid_b[i][...])
                k_in = _c(hk)
            k_t = _softplus(lax.dot_general(k_last_w[...], k_in,
                                            (((1,), (1,)), ((), ())),
                                            preferred_element_type=f32)
                            + k_last_b[...])               # (1, TB)
        else:
            k_t = k_sp_ref[...]                            # (1, 1)

        out_t = f_out_t * (k_t * inv_t)                    # (act_dim, TB)
        if squash:
            out_t = scale_ref[...] * jnp.tanh(out_t) + shift_ref[...]
        out_ref[...] = out_t.astype(out_ref.dtype)

    return kernel


# ----------------------------------------------------------------------------
# Wrapper: batch tiling, resident-weight BlockSpecs, transposed lane-dense output.
# ----------------------------------------------------------------------------
def determ_policy_forward(obs, pi_ws, pi_bs, *, local, k_ws=None, k_bs=None,
                          k_raw=None, squash=True, act_high=None, act_low=None,
                          eps=1e-4, tile_batch=1024, matmul_dtype=jnp.bfloat16):
    """Fused DetermPolicy forward.

    All weights/biases are given in math (in, out) layout:
      pi_ws[i]: (sizes[i], sizes[i+1]),  pi_bs[i]: (1, sizes[i+1])  (same for k_ws/k_bs).
    The wrapper does all repacking (transposed last layers, fused first layer,
    bf16 casts); the kernel computes its epilogue in (act_dim, TB) layout and the
    wrapper transposes back.
    """
    f32 = jnp.float32
    cdt = jnp.dtype(matmul_dtype)
    approx = cdt != jnp.dtype(jnp.float32)      # approx reciprocal only in the fast path
    B, obs_dim = obs.shape
    n_pi = len(pi_ws)
    assert n_pi >= 2, "pi MLP needs at least one hidden layer"
    act_dim = pi_ws[-1].shape[1]
    n_k = len(k_ws) if local else 0
    fuse0 = bool(local and n_k >= 2)
    h0_pi = pi_ws[0].shape[1]
    if squash:
        assert act_high is not None and act_low is not None

    # --- batch tiling:
    #   * >= 2 (even) grid steps so v7x's two TensorCores both get work and the
    #     obs-tile DMA pipelines; v5e/v6e single-TC unaffected.
    #   * tb sized from B (batch-aware) so ragged batches don't pad-compute.
    #   * tb a multiple of 128 so the transposed (act_dim, tb) output block is
    #     lane-aligned (dense, unmasked stores).
    #   VMEM is nowhere near a limit even on v7x (64 MiB) at tb=1024/2048.
    ntiles = max(2, _cdiv(B, max(int(tile_batch), 128)))
    ntiles += ntiles % 2
    tb = _round_up(_cdiv(B, ntiles), 128)
    bp = tb * ntiles
    obs_f = obs.astype(f32)
    if bp != B:
        obs_f = jnp.pad(obs_f, ((0, bp - B), (0, 0)))

    # --- parameter packing (host side, once per call; all params stay VMEM-resident)
    w_last_t = jnp.asarray(pi_ws[-1], f32).T.astype(cdt)          # (act_dim, H_last)
    b_last_col = jnp.asarray(pi_bs[-1], f32).reshape(act_dim, 1)  # (act_dim, 1)
    pi_hw = [jnp.asarray(w, f32).astype(cdt) for w in pi_ws[:-1]]
    pi_hb = [jnp.asarray(b, f32).reshape(1, -1) for b in pi_bs[:-1]]

    extra = []
    if fuse0:
        # One (obs, H_pi0 + H_k0) weight: layer-0 of pi and of Lips_K share a matmul.
        w0f = jnp.concatenate([jnp.asarray(pi_ws[0], f32),
                               jnp.asarray(k_ws[0], f32)], axis=1).astype(cdt)
        b0f = jnp.concatenate([jnp.asarray(pi_bs[0], f32).reshape(1, -1),
                               jnp.asarray(k_bs[0], f32).reshape(1, -1)], axis=1)
        fwd_ws = [w0f] + pi_hw[1:] + [w_last_t]
        fwd_bs = [b0f] + pi_hb[1:] + [b_last_col]
        extra = [pi_hw[0]]                 # un-fused pi layer-0 weight for the Jacobian sweep
    else:
        fwd_ws = pi_hw + [w_last_t]
        fwd_bs = pi_hb + [b_last_col]

    args = [obs_f] + fwd_ws + fwd_bs + extra

    if local:
        k_last_row = jnp.asarray(k_ws[-1], f32).T.astype(cdt)     # (1, Hk_last) or (1, obs)
        k_last_b = jnp.asarray(k_bs[-1], f32).reshape(1, 1)
        if n_k >= 2:
            k_hw = [jnp.asarray(w, f32).astype(cdt) for w in k_ws[1:-1]]
            k_hb = [jnp.asarray(b, f32).reshape(1, -1) for b in k_bs[1:-1]]
        else:
            k_hw, k_hb = [], []
        args += k_hw + [k_last_row] + k_hb + [k_last_b]
    else:
        args += [_softplus(jnp.asarray(k_raw, f32)).reshape(1, 1)]   # plain-JAX softplus(K)

    if squash:
        hi = jnp.asarray(act_high, f32).reshape(act_dim, 1)
        lo = jnp.asarray(act_low, f32).reshape(act_dim, 1)
        args += [(hi - lo) / 2.0, (hi + lo) / 2.0]

    in_specs = [pl.BlockSpec((tb, obs_dim), lambda i: (i, 0))]
    in_specs += [pl.BlockSpec(a.shape, lambda i: (0, 0)) for a in args[1:]]

    kernel = _make_kernel(n_pi=n_pi, n_k=n_k, act_dim=act_dim, obs_dim=obs_dim,
                          h0_pi=h0_pi, local=local, fuse0=fuse0, squash=squash,
                          eps=float(eps), cdt=cdt, approx=approx)

    out_t = pl.pallas_call(
        kernel,
        out_shape=jax.ShapeDtypeStruct((act_dim, bp), f32),
        grid=(ntiles,),
        in_specs=in_specs,
        out_specs=pl.BlockSpec((act_dim, tb), lambda i: (0, i)),
        compiler_params=pltpu.CompilerParams(
            dimension_semantics=("parallel",)),     # batch tiles split across v7x's 2 TCs
    )(*args)
    return out_t.T[:B]


# ----------------------------------------------------------------------------
# Deterministic parameter init (mirrors the PyTorch module):
# xavier_normal_ weights (next layer is Tanh/Softplus/Identity, never ReLU here),
# torch-Linear-style uniform biases, last Lips_K bias += Lips_start.
# All weights returned in (in, out) layout, biases (1, out).
# ----------------------------------------------------------------------------
def init_mlp_params(key, sizes, *, last_bias_add=0.0):
    ws, bs = [], []
    n = len(sizes) - 1
    for j in range(n):
        key, kw, kb = jax.random.split(key, 3)
        fan_in, fan_out = sizes[j], sizes[j + 1]
        std = (2.0 / (fan_in + fan_out)) ** 0.5                  # xavier_normal_
        w = std * jax.random.normal(kw, (fan_in, fan_out), dtype=jnp.float32)
        bound = 1.0 / (fan_in ** 0.5)
        b = jax.random.uniform(kb, (1, fan_out), jnp.float32, -bound, bound)
        if j == n - 1:
            b = b + jnp.float32(last_bias_add)
        ws.append(w)
        bs.append(b)
    return ws, bs


# ----------------------------------------------------------------------------
# Pure-JAX reference (independent of the kernel's hand-rolled reverse mode:
# the Jacobian comes from vmap(jacrev)).
# ----------------------------------------------------------------------------
def _ref_mlp(x, ws, bs):
    h = x
    for w, b in zip(ws[:-1], bs[:-1]):
        h = jnp.tanh(h @ w + b)
    return h @ ws[-1] + bs[-1]


def reference_forward(obs, pi_ws, pi_bs, *, local, k_ws=None, k_bs=None, k_raw=None,
                      squash=True, act_high=None, act_low=None, eps=1e-4):
    f_out = _ref_mlp(obs, pi_ws, pi_bs)
    jac = jax.vmap(jax.jacrev(lambda xx: _ref_mlp(xx[None, :], pi_ws, pi_bs)[0]))(obs)
    norm = jnp.sqrt(jnp.sum(jac * jac, axis=(1, 2)))[:, None]    # Frobenius
    if local:
        hk = obs
        for w, b in zip(k_ws[:-1], k_bs[:-1]):
            hk = jnp.tanh(hk @ w + b)
        k_val = _softplus(hk @ k_ws[-1] + k_bs[-1])
    else:
        k_val = _softplus(jnp.asarray(k_raw, jnp.float32))
    out = k_val * f_out / (norm + eps)
    if squash:
        hi = jnp.asarray(act_high, jnp.float32)
        lo = jnp.asarray(act_low, jnp.float32)
        out = (hi - lo) / 2.0 * jnp.tanh(out) + (hi + lo) / 2.0
    return out


if __name__ == "__main__":
    key = jax.random.PRNGKey(0)
    obs_dim, act_dim = 32, 2
    hidden_sizes = (64, 64)
    lips_hidden_sizes = (64,)
    lips_init_value = 1.0
    eps = 1e-4
    act_high = jnp.array([1.0, 2.0], jnp.float32)
    act_low = jnp.array([-1.0, -0.5], jnp.float32)

    k0, k1, k2, k3 = jax.random.split(key, 4)
    pi_sizes = [obs_dim] + list(hidden_sizes) + [act_dim]
    pi_ws, pi_bs = init_mlp_params(k1, pi_sizes)
    lips_sizes = [obs_dim] + list(lips_hidden_sizes) + [1]
    k_ws, k_bs = init_mlp_params(k2, lips_sizes, last_bias_add=lips_init_value)

    # ---- local_lips=True, squash_action=True ----
    batch = 8
    obs = jax.random.normal(k0, (batch, obs_dim), dtype=jnp.float32)
    ref = reference_forward(obs, pi_ws, pi_bs, local=True, k_ws=k_ws, k_bs=k_bs,
                            squash=True, act_high=act_high, act_low=act_low, eps=eps)

    # exact path (f32 MXU operands, exact divide): tight tolerance
    out_f32 = determ_policy_forward(obs, pi_ws, pi_bs, local=True, k_ws=k_ws, k_bs=k_bs,
                                    squash=True, act_high=act_high, act_low=act_low,
                                    eps=eps, matmul_dtype=jnp.float32)
    jax.block_until_ready(out_f32)
    assert out_f32.shape == (batch, act_dim)
    assert jnp.allclose(out_f32, ref, atol=2e-3, rtol=2e-3), (
        f"local f32 mismatch: max err {float(jnp.max(jnp.abs(out_f32 - ref)))}")

    # fast path (bf16 MXU operands + approx reciprocal, default): looser tolerance
    out_bf16 = determ_policy_forward(obs, pi_ws, pi_bs, local=True, k_ws=k_ws, k_bs=k_bs,
                                     squash=True, act_high=act_high, act_low=act_low,
                                     eps=eps)
    jax.block_until_ready(out_bf16)
    assert out_bf16.shape == (batch, act_dim)
    assert jnp.allclose(out_bf16, ref, atol=3e-2, rtol=3e-2), (
        f"local bf16 mismatch: max err {float(jnp.max(jnp.abs(out_bf16 - ref)))}")

    # ---- local_lips=False (scalar K); batch=10 exercises padding / ragged tb ----
    batch2 = 10
    obs2 = jax.random.normal(k3, (batch2, obs_dim), dtype=jnp.float32)
    out2 = determ_policy_forward(obs2, pi_ws, pi_bs, local=False, k_raw=lips_init_value,
                                 squash=True, act_high=act_high, act_low=act_low,
                                 eps=eps, matmul_dtype=jnp.float32)
    jax.block_until_ready(out2)
    ref2 = reference_forward(obs2, pi_ws, pi_bs, local=False, k_raw=lips_init_value,
                             squash=True, act_high=act_high, act_low=act_low, eps=eps)
    assert out2.shape == (batch2, act_dim)
    assert jnp.allclose(out2, ref2, atol=2e-3, rtol=2e-3), (
        f"global branch mismatch: max err {float(jnp.max(jnp.abs(out2 - ref2)))}")

    print("KERNEL_OK")
</pallas_src>

<mosaic_0001>
module attributes {stable_mosaic.version = 11 : i64} {
  func.func @kernel(%arg0: i32, %arg1: memref<128x32xf32, #tpu.memory_space<vmem>>, %arg2: memref<32x128xf32, #tpu.memory_space<vmem>>, %arg3: memref<64x64xf32, #tpu.memory_space<vmem>>, %arg4: memref<2x64xf32, #tpu.memory_space<vmem>>, %arg5: memref<1x128xf32, #tpu.memory_space<vmem>>, %arg6: memref<1x64xf32, #tpu.memory_space<vmem>>, %arg7: memref<2x1xf32, #tpu.memory_space<vmem>>, %arg8: memref<32x64xf32, #tpu.memory_space<vmem>>, %arg9: memref<1x64xf32, #tpu.memory_space<vmem>>, %arg10: memref<1x1xf32, #tpu.memory_space<vmem>>, %arg11: memref<2x1xf32, #tpu.memory_space<vmem>>, %arg12: memref<2x1xf32, #tpu.memory_space<vmem>>, %arg13: memref<2x128xf32, #tpu.memory_space<vmem>>) attributes {dimension_semantics = [#tpu.dimension_semantics<parallel>], iteration_bounds = array<i64: 2>, scalar_prefetch = 0 : i64, scratch_operands = 0 : i64, tpu.core_type = #tpu.core_type<tc>, window_params = [{transform_indices = @transform_0, window_bounds = array<i64: 128, 32>}, {pipeline_mode = #tpu.pipeline_mode<synchronous>, transform_indices = @transform_1, window_bounds = array<i64: 32, 128>}, {pipeline_mode = #tpu.pipeline_mode<synchronous>, transform_indices = @transform_2, window_bounds = array<i64: 64, 64>}, {pipeline_mode = #tpu.pipeline_mode<synchronous>, transform_indices = @transform_3, window_bounds = array<i64: 2, 64>}, {pipeline_mode = #tpu.pipeline_mode<synchronous>, transform_indices = @transform_4, window_bounds = array<i64: 1, 128>}, {pipeline_mode = #tpu.pipeline_mode<synchronous>, transform_indices = @transform_5, window_bounds = array<i64: 1, 64>}, {pipeline_mode = #tpu.pipeline_mode<synchronous>, transform_indices = @transform_6, window_bounds = array<i64: 2, 1>}, {pipeline_mode = #tpu.pipeline_mode<synchronous>, transform_indices = @transform_7, window_bounds = array<i64: 32, 64>}, {pipeline_mode = #tpu.pipeline_mode<synchronous>, transform_indices = @transform_8, window_bounds = array<i64: 1, 64>}, {pipeline_mode = #tpu.pipeline_mode<synchronous>, transform_indices = @transform_9, window_bounds = array<i64: 1, 1>}, {pipeline_mode = #tpu.pipeline_mode<synchronous>, transform_indices = @transform_10, window_bounds = array<i64: 2, 1>}, {pipeline_mode = #tpu.pipeline_mode<synchronous>, transform_indices = @transform_11, window_bounds = array<i64: 2, 1>}, {transform_indices = @transform_12, window_bounds = array<i64: 2, 128>}]} {
    %c0 = arith.constant 0 : index
    %c0_0 = arith.constant 0 : index
    %0 = vector.load %arg1[%c0, %c0_0] : memref<128x32xf32, #tpu.memory_space<vmem>>, vector<128x32xf32>
    %c0_1 = arith.constant 0 : index
    %c0_2 = arith.constant 0 : index
    %1 = vector.load %arg2[%c0_1, %c0_2] : memref<32x128xf32, #tpu.memory_space<vmem>>, vector<32x128xf32>
    %cst = arith.constant dense<0.000000e+00> : vector<128x128xf32>
    %2 = tpu.matmul %0, %1, %cst {dimension_numbers = #tpu.dot_dimension_numbers<[1], [0], [0], [1], [0, 0, 1, 1], [], []>} : vector<128x32xf32>, vector<32x128xf32>, vector<128x128xf32> -> vector<128x128xf32>
    %c0_3 = arith.constant 0 : index
    %c0_4 = arith.constant 0 : index
    %3 = vector.load %arg5[%c0_3, %c0_4] : memref<1x128xf32, #tpu.memory_space<vmem>>, vector<1x128xf32>
    %4 = vector.broadcast %3 : vector<1x128xf32> to vector<128x128xf32>
    %5 = arith.addf %2, %4 : vector<128x128xf32>
    %6 = math.tanh %5 : vector<128x128xf32>
    %7 = vector.extract_strided_slice %6 {offsets = [0, 0], sizes = [128, 64], strides = [1, 1]} : vector<128x128xf32> to vector<128x64xf32>
    %8 = vector.extract_strided_slice %6 {offsets = [0, 64], sizes = [128, 64], strides = [1, 1]} : vector<128x128xf32> to vector<128x64xf32>
    %9 = arith.mulf %7, %7 : vector<128x64xf32>
    %cst_5 = arith.constant 1.000000e+00 : f32
    %10 = vector.broadcast %cst_5 : f32 to vector<128x64xf32>
    %11 = arith.subf %10, %9 : vector<128x64xf32>
    %c0_6 = arith.constant 0 : index
    %c0_7 = arith.constant 0 : index
    %12 = vector.load %arg3[%c0_6, %c0_7] : memref<64x64xf32, #tpu.memory_space<vmem>>, vector<64x64xf32>
    %cst_8 = arith.constant dense<0.000000e+00> : vector<128x64xf32>
    %13 = tpu.matmul %7, %12, %cst_8 {dimension_numbers = #tpu.dot_dimension_numbers<[1], [0], [0], [1], [0, 0, 1, 1], [], []>} : vector<128x64xf32>, vector<64x64xf32>, vector<128x64xf32> -> vector<128x64xf32>
    %c0_9 = arith.constant 0 : index
    %c0_10 = arith.constant 0 : index
    %14 = vector.load %arg6[%c0_9, %c0_10] : memref<1x64xf32, #tpu.memory_space<vmem>>, vector<1x64xf32>
    %15 = vector.broadcast %14 : vector<1x64xf32> to vector<128x64xf32>
    %16 = arith.addf %13, %15 : vector<128x64xf32>
    %17 = math.tanh %16 : vector<128x64xf32>
    %18 = arith.mulf %17, %17 : vector<128x64xf32>
    %cst_11 = arith.constant 1.000000e+00 : f32
    %19 = vector.broadcast %cst_11 : f32 to vector<128x64xf32>
    %20 = arith.subf %19, %18 : vector<128x64xf32>
    %c0_12 = arith.constant 0 : index
    %c0_13 = arith.constant 0 : index
    %21 = vector.load %arg4[%c0_12, %c0_13] : memref<2x64xf32, #tpu.memory_space<vmem>>, vector<2x64xf32>
    %cst_14 = arith.constant dense<0.000000e+00> : vector<2x128xf32>
    %22 = tpu.matmul %21, %17, %cst_14 {dimension_numbers = #tpu.dot_dimension_numbers<[1], [1], [0], [0], [0, 0, 1, 0], [], []>} : vector<2x64xf32>, vector<128x64xf32>, vector<2x128xf32> -> vector<2x128xf32>
    %c0_15 = arith.constant 0 : index
    %c0_16 = arith.constant 0 : index
    %23 = vector.load %arg7[%c0_15, %c0_16] : memref<2x1xf32, #tpu.memory_space<vmem>>, vector<2x1xf32>
    %24 = vector.broadcast %23 : vector<2x1xf32> to vector<2x128xf32>
    %25 = arith.addf %22, %24 : vector<2x128xf32>
    %26 = vector.extract_strided_slice %21 {offsets = [0, 0], sizes = [1, 64], strides = [1, 1]} : vector<2x64xf32> to vector<1x64xf32>
    %27 = vector.broadcast %26 : vector<1x64xf32> to vector<128x64xf32>
    %28 = arith.mulf %27, %20 : vector<128x64xf32>
    %29 = vector.extract_strided_slice %21 {offsets = [1, 0], sizes = [1, 64], strides = [1, 1]} : vector<2x64xf32> to vector<1x64xf32>
    %30 = vector.broadcast %29 : vector<1x64xf32> to vector<128x64xf32>
    %31 = arith.mulf %30, %20 : vector<128x64xf32>
    %32 = tpu.concatenate %28, %31 in 0 : vector<128x64xf32>, vector<128x64xf32> -> vector<256x64xf32>
    %c0_17 = arith.constant 0 : index
    %c0_18 = arith.constant 0 : index
    %33 = vector.load %arg3[%c0_17, %c0_18] : memref<64x64xf32, #tpu.memory_space<vmem>>, vector<64x64xf32>
    %cst_19 = arith.constant dense<0.000000e+00> : vector<256x64xf32>
    %34 = tpu.matmul %32, %33, %cst_19 {dimension_numbers = #tpu.dot_dimension_numbers<[1], [1], [0], [0], [0, 0, 1, 0], [], []>} : vector<256x64xf32>, vector<64x64xf32>, vector<256x64xf32> -> vector<256x64xf32>
    %35 = tpu.concatenate %11, %11 in 0 : vector<128x64xf32>, vector<128x64xf32> -> vector<256x64xf32>
    %36 = arith.mulf %34, %35 : vector<256x64xf32>
    %c0_20 = arith.constant 0 : index
    %c0_21 = arith.constant 0 : index
    %37 = vector.load %arg8[%c0_20, %c0_21] : memref<32x64xf32, #tpu.memory_space<vmem>>, vector<32x64xf32>
    %cst_22 = arith.constant dense<0.000000e+00> : vector<256x32xf32>
    %38 = tpu.matmul %36, %37, %cst_22 {dimension_numbers = #tpu.dot_dimension_numbers<[1], [1], [0], [0], [0, 0, 1, 0], [], []>} : vector<256x64xf32>, vector<32x64xf32>, vector<256x32xf32> -> vector<256x32xf32>
    %39 = arith.mulf %38, %38 : vector<256x32xf32>
    %cst_23 = arith.constant 1.000000e+00 : f32
    %40 = vector.broadcast %cst_23 : f32 to vector<1x32xf32>
    %cst_24 = arith.constant dense<0.000000e+00> : vector<1x256xf32>
    %41 = tpu.matmul %40, %39, %cst_24 {dimension_numbers = #tpu.dot_dimension_numbers<[1], [1], [0], [0], [0, 0, 1, 0], [], []>} : vector<1x32xf32>, vector<256x32xf32>, vector<1x256xf32> -> vector<1x256xf32>
    %42 = vector.extract_strided_slice %41 {offsets = [0, 0], sizes = [1, 128], strides = [1, 1]} : vector<1x256xf32> to vector<1x128xf32>
    %43 = vector.extract_strided_slice %41 {offsets = [0, 128], sizes = [1, 128], strides = [1, 1]} : vector<1x256xf32> to vector<1x128xf32>
    %44 = arith.addf %42, %43 : vector<1x128xf32>
    %45 = math.sqrt %44 : vector<1x128xf32>
    %cst_25 = arith.constant 9.99999974E-5 : f32
    %46 = vector.broadcast %cst_25 : f32 to vector<1x128xf32>
    %47 = arith.addf %45, %46 : vector<1x128xf32>
    %48 = tpu.reciprocal %47 : vector<1x128xf32> -> vector<1x128xf32>
    %c0_26 = arith.constant 0 : index
    %c0_27 = arith.constant 0 : index
    %49 = vector.load %arg9[%c0_26, %c0_27] : memref<1x64xf32, #tpu.memory_space<vmem>>, vector<1x64xf32>
    %cst_28 = arith.constant dense<0.000000e+00> : vector<1x128xf32>
    %50 = tpu.matmul %49, %8, %cst_28 {dimension_numbers = #tpu.dot_dimension_numbers<[1], [1], [0], [0], [0, 0, 1, 0], [], []>} : vector<1x64xf32>, vector<128x64xf32>, vector<1x128xf32> -> vector<1x128xf32>
    %c0_29 = arith.constant 0 : index
    %c0_30 = arith.constant 0 : index
    %51 = vector.load %arg10[%c0_29, %c0_30] : memref<1x1xf32, #tpu.memory_space<vmem>>, vector<1x1xf32>
    %52 = vector.broadcast %51 : vector<1x1xf32> to vector<1x128xf32>
    %53 = arith.addf %50, %52 : vector<1x128xf32>
    %cst_31 = arith.constant 0.000000e+00 : f32
    %54 = vector.broadcast %cst_31 : f32 to vector<1x128xf32>
    %55 = arith.maximumf %53, %54 : vector<1x128xf32>
    %56 = math.absf %53 : vector<1x128xf32>
    %cst_32 = arith.constant 0.000000e+00 : f32
    %57 = vector.broadcast %cst_32 : f32 to vector<1x128xf32>
    %58 = arith.subf %57, %56 : vector<1x128xf32>
    %59 = math.exp %58 : vector<1x128xf32>
    %60 = math.log1p %59 : vector<1x128xf32>
    %61 = arith.addf %55, %60 : vector<1x128xf32>
    %62 = arith.mulf %61, %48 : vector<1x128xf32>
    %63 = vector.broadcast %62 : vector<1x128xf32> to vector<2x128xf32>
    %64 = arith.mulf %25, %63 : vector<2x128xf32>
    %c0_33 = arith.constant 0 : index
    %c0_34 = arith.constant 0 : index
    %65 = vector.load %arg11[%c0_33, %c0_34] : memref<2x1xf32, #tpu.memory_space<vmem>>, vector<2x1xf32>
    %66 = math.tanh %64 : vector<2x128xf32>
    %67 = vector.broadcast %65 : vector<2x1xf32> to vector<2x128xf32>
    %68 = arith.mulf %67, %66 : vector<2x128xf32>
    %c0_35 = arith.constant 0 : index
    %c0_36 = arith.constant 0 : index
    %69 = vector.load %arg12[%c0_35, %c0_36] : memref<2x1xf32, #tpu.memory_space<vmem>>, vector<2x1xf32>
    %70 = vector.broadcast %69 : vector<2x1xf32> to vector<2x128xf32>
    %71 = arith.addf %68, %70 : vector<2x128xf32>
    %c0_37 = arith.constant 0 : index
    %c0_38 = arith.constant 0 : index
    %72 = vector.load %arg13[%c0_37, %c0_38] : memref<2x128xf32, #tpu.memory_space<vmem>>, vector<2x128xf32>
    tpu.vector_store %arg13[%c0_37, %c0_38], %71 {strides = array<i32>} : memref<2x128xf32, #tpu.memory_space<vmem>>, vector<2x128xf32>,
    return
  }
  func.func @transform_0(%arg0: i32) -> (i32, i32) {
    %c0_i32 = arith.constant 0 : i32
    %c0_i32_0 = arith.constant 0 : i32
    return %arg0, %c0_i32 : i32, i32
  }
  func.func @transform_1(%arg0: i32) -> (i32, i32) {
    %c0_i32 = arith.constant 0 : i32
    %c0_i32_0 = arith.constant 0 : i32
    %c0_i32_1 = arith.constant 0 : i32
    return %c0_i32, %c0_i32_0 : i32, i32
  }
  func.func @transform_2(%arg0: i32) -> (i32, i32) {
    %c0_i32 = arith.constant 0 : i32
    %c0_i32_0 = arith.constant 0 : i32
    %c0_i32_1 = arith.constant 0 : i32
    return %c0_i32, %c0_i32_0 : i32, i32
  }
  func.func @transform_3(%arg0: i32) -> (i32, i32) {
    %c0_i32 = arith.constant 0 : i32
    %c0_i32_0 = arith.constant 0 : i32
    %c0_i32_1 = arith.constant 0 : i32
    return %c0_i32, %c0_i32_0 : i32, i32
  }
  func.func @transform_4(%arg0: i32) -> (i32, i32) {
    %c0_i32 = arith.constant 0 : i32
    %c0_i32_0 = arith.constant 0 : i32
    %c0_i32_1 = arith.constant 0 : i32
    return %c0_i32, %c0_i32_0 : i32, i32
  }
  func.func @transform_5(%arg0: i32) -> (i32, i32) {
    %c0_i32 = arith.constant 0 : i32
    %c0_i32_0 = arith.constant 0 : i32
    %c0_i32_1 = arith.constant 0 : i32
    return %c0_i32, %c0_i32_0 : i32, i32
  }
  func.func @transform_6(%arg0: i32) -> (i32, i32) {
    %c0_i32 = arith.constant 0 : i32
    %c0_i32_0 = arith.constant 0 : i32
    %c0_i32_1 = arith.constant 0 : i32
    return %c0_i32, %c0_i32_0 : i32, i32
  }
  func.func @transform_7(%arg0: i32) -> (i32, i32) {
    %c0_i32 = arith.constant 0 : i32
    %c0_i32_0 = arith.constant 0 : i32
    %c0_i32_1 = arith.constant 0 : i32
    return %c0_i32, %c0_i32_0 : i32, i32
  }
  func.func @transform_8(%arg0: i32) -> (i32, i32) {
    %c0_i32 = arith.constant 0 : i32
    %c0_i32_0 = arith.constant 0 : i32
    %c0_i32_1 = arith.constant 0 : i32
    return %c0_i32, %c0_i32_0 : i32, i32
  }
  func.func @transform_9(%arg0: i32) -> (i32, i32) {
    %c0_i32 = arith.constant 0 : i32
    %c0_i32_0 = arith.constant 0 : i32
    %c0_i32_1 = arith.constant 0 : i32
    return %c0_i32, %c0_i32_0 : i32, i32
  }
  func.func @transform_10(%arg0: i32) -> (i32, i32) {
    %c0_i32 = arith.constant 0 : i32
    %c0_i32_0 = arith.constant 0 : i32
    %c0_i32_1 = arith.constant 0 : i32
    return %c0_i32, %c0_i32_0 : i32, i32
  }
  func.func @transform_11(%arg0: i32) -> (i32, i32) {
    %c0_i32 = arith.constant 0 : i32
    %c0_i32_0 = arith.constant 0 : i32
    %c0_i32_1 = arith.constant 0 : i32
    return %c0_i32, %c0_i32_0 : i32, i32
  }
  func.func @transform_12(%arg0: i32) -> (i32, i32) {
    %c0_i32 = arith.constant 0 : i32
    %c0_i32_0 = arith.constant 0 : i32
    return %c0_i32, %arg0 : i32, i32
  }
}

</mosaic_0001>

<llo_original>
// kernel: tpu_custom_call.1
$region0: #{tpu_custom_call.1}
  #allocation0 [shape = 'u32[]', space=smem, size = 0x4, offset = 0x4, fixed_abs, tag = 'smem constant byte address 0x4 - core index']
  #allocation1 [shape = 'u32[144,128]{1,0:T(1,128)}', space=vmem, size = 0x12000, scoped, tag = 'internal scratch']
  #allocation2 [shape = 'f32[1,1]{1,0:T(1,128)S(1)}', space=vmem, size = 0x200, scoped, tag = 'scoped memory for tpu_custom_call.1']
  %s0 = inlined_call_operand.vmem [shape: f32[256,32], index: 0, kind: input, shape index: {}]
  %s1 = inlined_call_operand.vmem [shape: f32[32,128], index: 1, kind: input, shape index: {}]
  %s2 = inlined_call_operand.vmem [shape: f32[64,64], index: 2, kind: input, shape index: {}]
  %s3 = inlined_call_operand.vmem [shape: f32[2,64], index: 3, kind: input, shape index: {}]
  %s4 = inlined_call_operand.vmem [shape: f32[1,128], index: 4, kind: input, shape index: {}]
  %s5 = inlined_call_operand.vmem [shape: f32[1,64], index: 5, kind: input, shape index: {}]
  %s6 = inlined_call_operand.vmem [shape: f32[2,1], index: 6, kind: input, shape index: {}]
  %s7 = inlined_call_operand.vmem [shape: f32[32,64], index: 7, kind: input, shape index: {}]
  %s8 = inlined_call_operand.vmem [shape: f32[1,64], index: 8, kind: input, shape index: {}]
  %s9 = inlined_call_operand.<no memory space> [shape: f32[1,1], index: 9, kind: input, shape index: {}]
  %s10 = inlined_call_operand.vmem [shape: f32[2,1], index: 10, kind: input, shape index: {}]
  %s11 = inlined_call_operand.vmem [shape: f32[2,1], index: 11, kind: input, shape index: {}]
  %s12 = inlined_call_operand.hbm [shape: f32[2,256], index: 12, kind: output, shape index: {}]
  %s13 = sld [smem:[#allocation0]]
  $region81: #{tpu_custom_call.1} parent=0
    _
  %s15 = ssub.s32 1, %s13
  %s16 = scalar_select 0, %s15, %s13
  %v17 = vstv %s9
  %18 = vst [vmem:[#allocation2] sm:$0x1] %v17
  $region1: #{tpu_custom_call.1} parent=0
    #allocation3 [shape = 'u8[2048]{0}', space=vmem, size = 0x800, scoped, tag = 'output window, operand 0']
    #allocation4 [shape = 's32[2]{0}', space=sflag, size = 0x8, scoped, tag = 'scoped memory for tpu_custom_call.1']
    %19 = vsyncpa [#allocation4], 0
    %s20 = scalar_lea.sflag [#allocation4], 1
    %21 = vsyncpa %s20, 0
    loop: start=0, step=1, limit=4
    $region2: #{tpu_custom_call.1} parent=1 // loop_pre_header
      _
    $region3: #{tpu_custom_call.1} parent=1 // loop_header
      %s23 = sphi 0, %s27
      %p24 = scmp.ge.s32.totalorder %s23, 4
      %s33 = sphi 0, %s35
      %s36 = sphi 0, %s33
      %s37 = sphi 0, %s36
      %s53 = sphi 0, %s37
      %s57 = sphi 0, %s57
      %s59 = sphi 0, %s57
      %s60 = sphi 0, %s59
      %s74 = sphi 0, %s60
      %s78 = sphi 0, %s78
      %s80 = sphi 0, %s78
      %s81 = sphi 0, %s80
      %s95 = sphi 0, %s81
      %s99 = sphi 0, %s99
      %s101 = sphi 0, %s99
      %s102 = sphi 0, %s101
      %s116 = sphi 0, %s102
      %s120 = sphi 0, %s120
      %s122 = sphi 0, %s120
      %s123 = sphi 0, %s122
      %s137 = sphi 0, %s123
      %s141 = sphi 0, %s141
      %s143 = sphi 0, %s141
      %s144 = sphi 0, %s143
      %s158 = sphi 0, %s144
      %s162 = sphi 0, %s162
      %s164 = sphi 0, %s162
      %s165 = sphi 0, %s164
      %s179 = sphi 0, %s165
      %s183 = sphi 0, %s183
      %s185 = sphi 0, %s183
      %s186 = sphi 0, %s185
      %s200 = sphi 0, %s186
      %s204 = sphi 0, %s204
      %s206 = sphi 0, %s204
      %s207 = sphi 0, %s206
      %s221 = sphi 0, %s207
      %s225 = sphi 0, %s225
      %s227 = sphi 0, %s225
      %s228 = sphi 0, %s227
      %s242 = sphi 0, %s228
      %s246 = sphi 0, %s246
      %s248 = sphi 0, %s246
      %s249 = sphi 0, %s248
      %s263 = sphi 0, %s249
      %s267 = sphi 0, %s267
      %s269 = sphi 0, %s267
      %s270 = sphi 0, %s269
      %s284 = sphi 0, %s270
      %s290 = sphi 0, %s292
      %s293 = sphi 0, %s290
      %s294 = sphi 0, %s293
      %s310 = sphi 0, %s294
    $region4: #{tpu_custom_call.1} parent=1 // loop_header_branch
      %26 = sbr.rel (%p24) target = $region8
    $region5: #{tpu_custom_call.1} parent=1 // loop_body
      %s28 = ssub.s32 %s23, 1
      %s29 = ssub.s32 %s23, 2
      %s30 = sadd.s32 %s23, 1
      %s31 = ssub.s32 %s23, %s30
      %p32 = scmp.eq.s32.totalorder %s31, 0
      %s34 = sadd.s32 %s33, 1
      %s35 = scalar_select %p32, %s33, %s34
      %p38 = pneg %p32
      %p39 = scmp.eq.s32.totalorder %s23, 1
      %p40 = por %p38, %p39
      %p41 = scmp.ne.s32.totalorder %s33, %s36
      %p42 = scmp.eq.s32.totalorder %s23, 0
      %p43 = por %p41, %p42
      %p44 = scmp.ne.s32.totalorder %s33, %s36
      %p45 = scmp.eq.s32.totalorder %s28, 1
      %p46 = por %p44, %p45
      %p47 = scmp.ne.s32.totalorder %s36, %s37
      %p48 = scmp.eq.s32.totalorder %s28, 0
      %p49 = por %p47, %p48
      %p50 = scmp.ne.s32.totalorder %s36, %s37
      %p51 = scmp.eq.s32.totalorder %s29, 1
      %p52 = por %p50, %p51
      %p54 = scmp.ne.s32.totalorder %s37, %s53
      %p55 = scmp.eq.s32.totalorder %s29, 0
      %p56 = por %p54, %p55
      %s58 = sadd.s32 %s57, 1
      %p61 = scmp.eq.s32.totalorder %s23, 1
      %p62 = scmp.ne.s32.totalorder %s57, %s59
      %p63 = scmp.eq.s32.totalorder %s23, 0
      %p64 = por %p62, %p63
      %p65 = scmp.ne.s32.totalorder %s57, %s59
      %p66 = scmp.eq.s32.totalorder %s28, 1
      %p67 = por %p65, %p66
      %p68 = scmp.ne.s32.totalorder %s59, %s60
      %p69 = scmp.eq.s32.totalorder %s28, 0
      %p70 = por %p68, %p69
      %p71 = scmp.ne.s32.totalorder %s59, %s60
      %p72 = scmp.eq.s32.totalorder %s29, 1
      %p73 = por %p71, %p72
      %p75 = scmp.ne.s32.totalorder %s60, %s74
      %p76 = scmp.eq.s32.totalorder %s29, 0
      %p77 = por %p75, %p76
      %s79 = sadd.s32 %s78, 1
      %p82 = scmp.eq.s32.totalorder %s23, 1
      %p83 = scmp.ne.s32.totalorder %s78, %s80
      %p84 = scmp.eq.s32.totalorder %s23, 0
      %p85 = por %p83, %p84
      %p86 = scmp.ne.s32.totalorder %s78, %s80
      %p87 = scmp.eq.s32.totalorder %s28, 1
      %p88 = por %p86, %p87
      %p89 = scmp.ne.s32.totalorder %s80, %s81
      %p90 = scmp.eq.s32.totalorder %s28, 0
      %p91 = por %p89, %p90
      %p92 = scmp.ne.s32.totalorder %s80, %s81
      %p93 = scmp.eq.s32.totalorder %s29, 1
      %p94 = por %p92, %p93
      %p96 = scmp.ne.s32.totalorder %s81, %s95
      %p97 = scmp.eq.s32.totalorder %s29, 0
      %p98 = por %p96, %p97
      %s100 = sadd.s32 %s99, 1
      %p103 = scmp.eq.s32.totalorder %s23, 1
      %p104 = scmp.ne.s32.totalorder %s99, %s101
      %p105 = scmp.eq.s32.totalorder %s23, 0
      %p106 = por %p104, %p105
      %p107 = scmp.ne.s32.totalorder %s99, %s101
      %p108 = scmp.eq.s32.totalorder %s28, 1
      %p109 = por %p107, %p108
      %p110 = scmp.ne.s32.totalorder %s101, %s102
      %p111 = scmp.eq.s32.totalorder %s28, 0
      %p112 = por %p110, %p111
      %p113 = scmp.ne.s32.totalorder %s101, %s102
      %p114 = scmp.eq.s32.totalorder %s29, 1
      %p115 = por %p113, %p114
      %p117 = scmp.ne.s32.totalorder %s102, %s116
      %p118 = scmp.eq.s32.totalorder %s29, 0
      %p119 = por %p117, %p118
      %s121 = sadd.s32 %s120, 1
      %p124 = scmp.eq.s32.totalorder %s23, 1
      %p125 = scmp.ne.s32.totalorder %s120, %s122
      %p126 = scmp.eq.s32.totalorder %s23, 0
      %p127 = por %p125, %p126
      %p128 = scmp.ne.s32.totalorder %s120, %s122
      %p129 = scmp.eq.s32.totalorder %s28, 1
      %p130 = por %p128, %p129
      %p131 = scmp.ne.s32.totalorder %s122, %s123
      %p132 = scmp.eq.s32.totalorder %s28, 0
      %p133 = por %p131, %p132
      %p134 = scmp.ne.s32.totalorder %s122, %s123
      %p135 = scmp.eq.s32.totalorder %s29, 1
      %p136 = por %p134, %p135
      %p138 = scmp.ne.s32.totalorder %s123, %s137
      %p139 = scmp.eq.s32.totalorder %s29, 0
      %p140 = por %p138, %p139
      %s142 = sadd.s32 %s141, 1
      %p145 = scmp.eq.s32.totalorder %s23, 1
      %p146 = scmp.ne.s32.totalorder %s141, %s143
      %p147 = scmp.eq.s32.totalorder %s23, 0
      %p148 = por %p146, %p147
      %p149 = scmp.ne.s32.totalorder %s141, %s143
      %p150 = scmp.eq.s32.totalorder %s28, 1
      %p151 = por %p149, %p150
      %p152 = scmp.ne.s32.totalorder %s143, %s144
      %p153 = scmp.eq.s32.totalorder %s28, 0
      %p154 = por %p152, %p153
      %p155 = scmp.ne.s32.totalorder %s143, %s144
      %p156 = scmp.eq.s32.totalorder %s29, 1
      %p157 = por %p155, %p156
      %p159 = scmp.ne.s32.totalorder %s144, %s158
      %p160 = scmp.eq.s32.totalorder %s29, 0
      %p161 = por %p159, %p160
      %s163 = sadd.s32 %s162, 1
      %p166 = scmp.eq.s32.totalorder %s23, 1
      %p167 = scmp.ne.s32.totalorder %s162, %s164
      %p168 = scmp.eq.s32.totalorder %s23, 0
      %p169 = por %p167, %p168
      %p170 = scmp.ne.s32.totalorder %s162, %s164
      %p171 = scmp.eq.s32.totalorder %s28, 1
      %p172 = por %p170, %p171
      %p173 = scmp.ne.s32.totalorder %s164, %s165
      %p174 = scmp.eq.s32.totalorder %s28, 0
      %p175 = por %p173, %p174
      %p176 = scmp.ne.s32.totalorder %s164, %s165
      %p177 = scmp.eq.s32.totalorder %s29, 1
      %p178 = por %p176, %p177
      %p180 = scmp.ne.s32.totalorder %s165, %s179
      %p181 = scmp.eq.s32.totalorder %s29, 0
      %p182 = por %p180, %p181
      %s184 = sadd.s32 %s183, 1
      %p187 = scmp.eq.s32.totalorder %s23, 1
      %p188 = scmp.ne.s32.totalorder %s183, %s185
      %p189 = scmp.eq.s32.totalorder %s23, 0
      %p190 = por %p188, %p189
      %p191 = scmp.ne.s32.totalorder %s183, %s185
      %p192 = scmp.eq.s32.totalorder %s28, 1
      %p193 = por %p191, %p192
      %p194 = scmp.ne.s32.totalorder %s185, %s186
      %p195 = scmp.eq.s32.totalorder %s28, 0
      %p196 = por %p194, %p195
      %p197 = scmp.ne.s32.totalorder %s185, %s186
      %p198 = scmp.eq.s32.totalorder %s29, 1
      %p199 = por %p197, %p198
      %p201 = scmp.ne.s32.totalorder %s186, %s200
      %p202 = scmp.eq.s32.totalorder %s29, 0
      %p203 = por %p201, %p202
      %s205 = sadd.s32 %s204, 1
      %p208 = scmp.eq.s32.totalorder %s23, 1
      %p209 = scmp.ne.s32.totalorder %s204, %s206
      %p210 = scmp.eq.s32.totalorder %s23, 0
      %p211 = por %p209, %p210
      %p212 = scmp.ne.s32.totalorder %s204, %s206
      %p213 = scmp.eq.s32.totalorder %s28, 1
      %p214 = por %p212, %p213
      %p215 = scmp.ne.s32.totalorder %s206, %s207
      %p216 = scmp.eq.s32.totalorder %s28, 0
      %p217 = por %p215, %p216
      %p218 = scmp.ne.s32.totalorder %s206, %s207
      %p219 = scmp.eq.s32.totalorder %s29, 1
      %p220 = por %p218, %p219
      %p222 = scmp.ne.s32.totalorder %s207, %s221
      %p223 = scmp.eq.s32.totalorder %s29, 0
      %p224 = por %p222, %p223
      %s226 = sadd.s32 %s225, 1
      %p229 = scmp.eq.s32.totalorder %s23, 1
      %p230 = scmp.ne.s32.totalorder %s225, %s227
      %p231 = scmp.eq.s32.totalorder %s23, 0
      %p232 = por %p230, %p231
      %p233 = scmp.ne.s32.totalorder %s225, %s227
      %p234 = scmp.eq.s32.totalorder %s28, 1
      %p235 = por %p233, %p234
      %p236 = scmp.ne.s32.totalorder %s227, %s228
      %p237 = scmp.eq.s32.totalorder %s28, 0
      %p238 = por %p236, %p237
      %p239 = scmp.ne.s32.totalorder %s227, %s228
      %p240 = scmp.eq.s32.totalorder %s29, 1
      %p241 = por %p239, %p240
      %p243 = scmp.ne.s32.totalorder %s228, %s242
      %p244 = scmp.eq.s32.totalorder %s29, 0
      %p245 = por %p243, %p244
      %s247 = sadd.s32 %s246, 1
      %p250 = scmp.eq.s32.totalorder %s23, 1
      %p251 = scmp.ne.s32.totalorder %s246, %s248
      %p252 = scmp.eq.s32.totalorder %s23, 0
      %p253 = por %p251, %p252
      %p254 = scmp.ne.s32.totalorder %s246, %s248
      %p255 = scmp.eq.s32.totalorder %s28, 1
      %p256 = por %p254, %p255
      %p257 = scmp.ne.s32.totalorder %s248, %s249
      %p258 = scmp.eq.s32.totalorder %s28, 0
      %p259 = por %p257, %p258
      %p260 = scmp.ne.s32.totalorder %s248, %s249
      %p261 = scmp.eq.s32.totalorder %s29, 1
      %p262 = por %p260, %p261
      %p264 = scmp.ne.s32.totalorder %s249, %s263
      %p265 = scmp.eq.s32.totalorder %s29, 0
      %p266 = por %p264, %p265
      %s268 = sadd.s32 %s267, 1
      %p271 = scmp.eq.s32.totalorder %s23, 1
      %p272 = scmp.ne.s32.totalorder %s267, %s269
      %p273 = scmp.eq.s32.totalorder %s23, 0
      %p274 = por %p272, %p273
      %p275 = scmp.ne.s32.totalorder %s267, %s269
      %p276 = scmp.eq.s32.totalorder %s28, 1
      %p277 = por %p275, %p276
      %p278 = scmp.ne.s32.totalorder %s269, %s270
      %p279 = scmp.eq.s32.totalorder %s28, 0
      %p280 = por %p278, %p279
      %p281 = scmp.ne.s32.totalorder %s269, %s270
      %p282 = scmp.eq.s32.totalorder %s29, 1
      %p283 = por %p281, %p282
      %p285 = scmp.ne.s32.totalorder %s270, %s284
      %p286 = scmp.eq.s32.totalorder %s29, 0
      %p287 = por %p285, %p286
      %s288 = ssub.s32 %s23, %s30
      %p289 = scmp.eq.s32.totalorder %s288, 0
      %s291 = sadd.s32 %s290, 1
      %s292 = scalar_select %p289, %s290, %s291
      %p295 = pneg %p289
      %p296 = scmp.eq.s32.totalorder %s23, 1
      %p297 = por %p295, %p296
      %p298 = scmp.ne.s32.totalorder %s290, %s293
      %p299 = scmp.eq.s32.totalorder %s23, 0
      %p300 = por %p298, %p299
      %p301 = scmp.ne.s32.totalorder %s290, %s293
      %p302 = scmp.eq.s32.totalorder %s28, 1
      %p303 = por %p301, %p302
      %p304 = scmp.ne.s32.totalorder %s293, %s294
      %p305 = scmp.eq.s32.totalorder %s28, 0
      %p306 = por %p304, %p305
      %p307 = scmp.ne.s32.totalorder %s293, %s294
      %p308 = scmp.eq.s32.totalorder %s29, 1
      %p309 = por %p307, %p308
      %p311 = scmp.ne.s32.totalorder %s294, %s310
      %p312 = scmp.eq.s32.totalorder %s29, 0
      %p313 = por %p311, %p312
      %p314 = scmp.le.s32.totalorder 1, %s23
      %p315 = scmp.lt.s32.totalorder %s23, 3
      %p316 = pnand %p314, %p315
      %p317 = pneg %p316
      // Predicated region
      $region9: #{tpu_custom_call.1} parent=5 // pred_check
        _
      $region10: #{tpu_custom_call.1} parent=5 // pred_check_branch
        %319 = sbr.rel (%p316) target = $region12
      $region11: #{tpu_custom_call.1} parent=5 // pred_region
        %s320 = ssub.s32 %s23, 1
        // Predicated region
        $region13: #{tpu_custom_call.1} parent=11 // pred_check
          %p321 = pneg %p70
        $region14: #{tpu_custom_call.1} parent=11 // pred_check_branch
          %323 = sbr.rel (%p321) target = $region16
        $region15: #{tpu_custom_call.1} parent=11 // pred_region
          _
        $region16: #{tpu_custom_call.1} parent=11 // pred_fallthru
          _
        // Predicated region
        $region17: #{tpu_custom_call.1} parent=11 // pred_check
          %p324 = pneg %p91
        $region18: #{tpu_custom_call.1} parent=11 // pred_check_branch
          %326 = sbr.rel (%p324) target = $region20
        $region19: #{tpu_custom_call.1} parent=11 // pred_region
          _
        $region20: #{tpu_custom_call.1} parent=11 // pred_fallthru
          _
        // Predicated region
        $region21: #{tpu_custom_call.1} parent=11 // pred_check
          %p327 = pneg %p112
        $region22: #{tpu_custom_call.1} parent=11 // pred_check_branch
          %329 = sbr.rel (%p327) target = $region24
        $region23: #{tpu_custom_call.1} parent=11 // pred_region
          _
        $region24: #{tpu_custom_call.1} parent=11 // pred_fallthru
          _
        // Predicated region
        $region25: #{tpu_custom_call.1} parent=11 // pred_check
          %p330 = pneg %p133
        $region26: #{tpu_custom_call.1} parent=11 // pred_check_branch
          %332 = sbr.rel (%p330) target = $region28
        $region27: #{tpu_custom_call.1} parent=11 // pred_region
          _
        $region28: #{tpu_custom_call.1} parent=11 // pred_fallthru
          _
        // Predicated region
        $region29: #{tpu_custom_call.1} parent=11 // pred_check
          %p333 = pneg %p154
        $region30: #{tpu_custom_call.1} parent=11 // pred_check_branch
          %335 = sbr.rel (%p333) target = $region32
        $region31: #{tpu_custom_call.1} parent=11 // pred_region
          _
        $region32: #{tpu_custom_call.1} parent=11 // pred_fallthru
          _
        // Predicated region
        $region33: #{tpu_custom_call.1} parent=11 // pred_check
          %p336 = pneg %p175
        $region34: #{tpu_custom_call.1} parent=11 // pred_check_branch
          %338 = sbr.rel (%p336) target = $region36
        $region35: #{tpu_custom_call.1} parent=11 // pred_region
          _
        $region36: #{tpu_custom_call.1} parent=11 // pred_fallthru
          _
        // Predicated region
        $region37: #{tpu_custom_call.1} parent=11 // pred_check
          %p339 = pneg %p196
        $region38: #{tpu_custom_call.1} parent=11 // pred_check_branch
          %341 = sbr.rel (%p339) target = $region40
        $region39: #{tpu_custom_call.1} parent=11 // pred_region
          _
        $region40: #{tpu_custom_call.1} parent=11 // pred_fallthru
          _
        // Predicated region
        $region41: #{tpu_custom_call.1} parent=11 // pred_check
          %p342 = pneg %p217
        $region42: #{tpu_custom_call.1} parent=11 // pred_check_branch
          %344 = sbr.rel (%p342) target = $region44
        $region43: #{tpu_custom_call.1} parent=11 // pred_region
          _
        $region44: #{tpu_custom_call.1} parent=11 // pred_fallthru
          _
        // Predicated region
        $region45: #{tpu_custom_call.1} parent=11 // pred_check
          %p345 = pneg %p238
        $region46: #{tpu_custom_call.1} parent=11 // pred_check_branch
          %347 = sbr.rel (%p345) target = $region48
        $region47: #{tpu_custom_call.1} parent=11 // pred_region
          _
        $region48: #{tpu_custom_call.1} parent=11 // pred_fallthru
          _
        // Predicated region
        $region49: #{tpu_custom_call.1} parent=11 // pred_check
          %p348 = pneg %p259
        $region50: #{tpu_custom_call.1} parent=11 // pred_check_branch
          %350 = sbr.rel (%p348) target = $region52
        $region51: #{tpu_custom_call.1} parent=11 // pred_region
          _
        $region52: #{tpu_custom_call.1} parent=11 // pred_fallthru
          _
        // Predicated region
        $region53: #{tpu_custom_call.1} parent=11 // pred_check
          %p351 = pneg %p280
        $region54: #{tpu_custom_call.1} parent=11 // pred_check_branch
          %353 = sbr.rel (%p351) target = $region56
        $region55: #{tpu_custom_call.1} parent=11 // pred_region
          _
        $region56: #{tpu_custom_call.1} parent=11 // pred_fallthru
          _
      $region12: #{tpu_custom_call.1} parent=5 // pred_fallthru
        _
      %p354 = scmp.lt.s32.totalorder %s23, 2
      // Predicated region
      $region57: #{tpu_custom_call.1} parent=5 // pred_check
        %p355 = pneg %p354
      $region58: #{tpu_custom_call.1} parent=5 // pred_check_branch
        %357 = sbr.rel (%p355) target = $region60
      $region59: #{tpu_custom_call.1} parent=5 // pred_region
        // Predicated region
        $region61: #{tpu_custom_call.1} parent=59 // pred_check
          %p358 = pneg %p43
        $region62: #{tpu_custom_call.1} parent=59 // pred_check_branch
          %360 = sbr.rel (%p358) target = $region64
        $region63: #{tpu_custom_call.1} parent=59 // pred_region
          %s361 = smul.u32 16, %s23
          %p362 = scmp.lt.s32.totalorder %s361, 31
          %s363 = scalar_select %p362, %s361, 31
          %s364 = smul.addr %s363, 8
          %s365 = scalar_lea.vmem %s0, %s364
          %s366 = smul.u32 16, %s23
        $region64: #{tpu_custom_call.1} parent=59 // pred_fallthru
          _
      $region60: #{tpu_custom_call.1} parent=5 // pred_fallthru
        _
      %p367 = scmp.le.s32.totalorder 1, %s23
      %p368 = scmp.lt.s32.totalorder %s23, 3
      %p369 = pnand %p367, %p368
      %p370 = pneg %p369
      // Predicated region
      $region65: #{tpu_custom_call.1} parent=5 // pred_check
        _
      $region66: #{tpu_custom_call.1} parent=5 // pred_check_branch
        %372 = sbr.rel (%p369) target = $region68
      $region67: #{tpu_custom_call.1} parent=5 // pred_region
        %s373 = ssub.s32 %s23, 1
        %s374 = smul.u32 16, %s28
        %p375 = scmp.lt.s32.totalorder %s374, 31
        %s376 = scalar_select %p375, %s374, 31
        %s377 = smul.addr %s376, 8
        %s378 = scalar_lea.vmem %s0, %s377
        %p379 = pneg %p49
        %p380 = pneg %p46
        %p381 = pneg %p70
        %p382 = pneg %p67
        %p383 = pneg %p91
        %p384 = pneg %p88
        %p385 = pneg %p112
        %p386 = pneg %p109
        %p387 = pneg %p133
        %p388 = pneg %p130
        %p389 = pneg %p154
        %p390 = pneg %p151
        %p391 = pneg %p175
        %p392 = pneg %p172
        %p393 = pneg %p196
        %p394 = pneg %p193
        %p395 = pneg %p217
        %p396 = pneg %p214
        %p397 = pneg %p238
        %p398 = pneg %p235
        %p399 = pneg %p259
        %p400 = pneg %p256
        %p401 = pneg %p280
        %p402 = pneg %p277
        %p403 = pneg %p306
        %p404 = pneg %p303
        %s405 = sand.u32 %s293, 1
        %s406 = scalar_lea.sflag [#allocation4], %s405
        %s407 = sand.u32 %s293, 1
        %s408 = smul.addr %s407, 2
        %s409 = scalar_lea.vmem [#allocation3], %s408
        %s410 = smul.u32 16, %s28
        %p411 = scmp.lt.s32.totalorder %s410, 31
        %s412 = scalar_select %p411, %s410, 31
        %s413 = smul.addr %s412, 8
        %s414 = scalar_lea.vmem %s0, %s413
        %s415 = smul.u32 16, %s28
        %v416 = vld [vmem:[%s414] sm:$0xff]
        %v417 = vld [vmem:[%s414 + $0x8] sm:$0xff]
        %v418 = vld [vmem:[%s414 + $0x10] sm:$0xff]
        %v419 = vld [vmem:[%s414 + $0x18] sm:$0xff]
        %v420 = vld [vmem:[%s414 + $0x20] sm:$0xff]
        %v421 = vld [vmem:[%s414 + $0x28] sm:$0xff]
        %v422 = vld [vmem:[%s414 + $0x30] sm:$0xff]
        %v423 = vld [vmem:[%s414 + $0x38] sm:$0xff]
        %v424 = vld [vmem:[%s414 + $0x40] sm:$0xff]
        %v425 = vld [vmem:[%s414 + $0x48] sm:$0xff]
        %v426 = vld [vmem:[%s414 + $0x50] sm:$0xff]
        %v427 = vld [vmem:[%s414 + $0x58] sm:$0xff]
        %v428 = vld [vmem:[%s414 + $0x60] sm:$0xff]
        %v429 = vld [vmem:[%s414 + $0x68] sm:$0xff]
        %v430 = vld [vmem:[%s414 + $0x70] sm:$0xff]
        %v431 = vld [vmem:[%s414 + $0x78] sm:$0xff]
        %v432 = vld [vmem:[%s1] sm:$0xff]
        %v433 = vld [vmem:[%s1 + $0x8] sm:$0xff]
        %v434 = vld [vmem:[%s1 + $0x10] sm:$0xff]
        %v435 = vld [vmem:[%s1 + $0x18] sm:$0xff]
        %v436 = vld [vmem:[%s4] sm:$0x1]
        %v438 = vlaneseq
        %v439 = vshrl.u32 %v438, 7
        %v440 = vsub.s32 0, %v439
        %v441 = vrot.slane %v436, %v440
        %vm443 = vcmask 261120
        %v445 = vsel %vm443, %v416, 0
        %v448 = vsel %vm443, %v417, 0
        %v451 = vsel %vm443, %v418, 0
        %v454 = vsel %vm443, %v419, 0
        %v457 = vsel %vm443, %v420, 0
        %v460 = vsel %vm443, %v421, 0
        %v463 = vsel %vm443, %v422, 0
        %v466 = vsel %vm443, %v423, 0
        %v469 = vsel %vm443, %v424, 0
        %v472 = vsel %vm443, %v425, 0
        %v475 = vsel %vm443, %v426, 0
        %v478 = vsel %vm443, %v427, 0
        %v481 = vsel %vm443, %v428, 0
        %v484 = vsel %vm443, %v429, 0
        %v487 = vsel %vm443, %v430, 0
        %v490 = vsel %vm443, %v431, 0
        %492 = vmatprep.subr.mxu0 0.0
        %493 = vmatpush1.msra.mxu0 0.0
        %494 = vmatprep.subr.mxu0 0.0
        %495 = vmatpush1.msra.mxu0 0.0
        %496 = vmatprep.subr.mxu0 0.0
        %497 = vmatpush1.msra.mxu0 0.0
        %498 = vmatprep.subr.mxu0 0.0
        %499 = vmatpush1.msra.mxu0 0.0
        %500 = vmatprep.subr.mxu0 0.0
        %501 = vmatpush1.msra.mxu0 0.0
        %502 = vmatprep.subr.mxu0 0.0
        %503 = vmatpush1.msra.mxu0 0.0
        %504 = vmatprep.subr.mxu0 0.0
        %505 = vmatpush1.msra.mxu0 0.0
        %506 = vmatprep.subr.mxu0 0.0
        %507 = vmatpush1.msra.mxu0 0.0
        %508 = vmatprep.subr.mxu0 0.0
        %509 = vmatpush1.msra.mxu0 0.0
        %510 = vmatprep.subr.mxu0 0.0
        %511 = vmatpush1.msra.mxu0 0.0
        %512 = vmatprep.subr.mxu0 0.0
        %513 = vmatpush1.msra.mxu0 0.0
        %514 = vmatprep.subr.mxu0 0.0
        %515 = vmatpush1.msra.mxu0 0.0
        %516 = vmatprep.subr.mxu0 0.0
        %517 = vmatpush1.msra.mxu0 %v435
        %518 = vmatprep.subr.mxu0 0.0
        %519 = vmatpush1.msra.mxu0 %v434
        %520 = vmatprep.subr.mxu0 0.0
        %521 = vmatpush1.msra.mxu0 %v433
        %522 = vmatprep.subr.mxu0 0.0
        %523 = vmatpush1.msra.mxu0 %v432
        %524 = vmatprep.subr.mxu0 0.0
        %525 = vmatpush2.msra.mxu0 0.0
        %526 = vmatprep.subr.mxu0 0.0
        %527 = vmatpush2.msra.mxu0 0.0
        %528 = vmatprep.subr.mxu0 0.0
        %529 = vmatpush2.msra.mxu0 0.0
        %530 = vmatprep.subr.mxu0 0.0
        %531 = vmatpush2.msra.mxu0 0.0
        %532 = vmatprep.subr.mxu0 0.0
        %533 = vmatpush2.msra.mxu0 0.0
        %534 = vmatprep.subr.mxu0 0.0
        %535 = vmatpush2.msra.mxu0 0.0
        %536 = vmatprep.subr.mxu0 0.0
        %537 = vmatpush2.msra.mxu0 0.0
        %538 = vmatprep.subr.mxu0 0.0
        %539 = vmatpush2.msra.mxu0 0.0
        %540 = vmatprep.subr.mxu0 0.0
        %541 = vmatpush2.msra.mxu0 0.0
        %542 = vmatprep.subr.mxu0 0.0
        %543 = vmatpush2.msra.mxu0 0.0
        %544 = vmatprep.subr.mxu0 0.0
        %545 = vmatpush2.msra.mxu0 0.0
        %546 = vmatprep.subr.mxu0 0.0
        %547 = vmatpush2.msra.mxu0 0.0
        %548 = vmatprep.subr.mxu0 0.0
        %549 = vmatpush2.msra.mxu0 0.0
        %550 = vmatprep.subr.mxu0 0.0
        %551 = vmatpush2.msra.mxu0 0.0
        %552 = vmatprep.subr.mxu0 0.0
        %553 = vmatpush2.msra.mxu0 0.0
        %554 = vmatprep.subr.mxu0 0.0
        %555 = vmatpush2.msra.mxu0 0.0
        %556 = vmatprep.mubr.f32.mxu0 0.0
        %557 = vmatmul.mubr.f32.gmra.mxu0 %v445
        %v558 = vpop.f32.mrf.mxu0
        %v559 = vadd.f32 %v441, %v558
        %v560 = vpop.f32.mrf.mxu0
        %561 = vmatprep.mubr.f32.mxu0 0.0
        %562 = vmatmul.mubr.f32.gmra.mxu0 %v448
        %v563 = vpop.f32.mrf.mxu0
        %v564 = vadd.f32 %v441, %v563
        %v565 = vpop.f32.mrf.mxu0
        %566 = vmatprep.mubr.f32.mxu0 0.0
        %567 = vmatmul.mubr.f32.gmra.mxu0 %v451
        %v568 = vpop.f32.mrf.mxu0
        %v569 = vadd.f32 %v441, %v568
        %v570 = vpop.f32.mrf.mxu0
        %571 = vmatprep.mubr.f32.mxu0 0.0
        %572 = vmatmul.mubr.f32.gmra.mxu0 %v454
        %v573 = vpop.f32.mrf.mxu0
        %v574 = vadd.f32 %v441, %v573
        %v575 = vpop.f32.mrf.mxu0
        %576 = vmatprep.mubr.f32.mxu0 0.0
        %577 = vmatmul.mubr.f32.gmra.mxu0 %v457
        %v578 = vpop.f32.mrf.mxu0
        %v579 = vadd.f32 %v441, %v578
        %v580 = vpop.f32.mrf.mxu0
        %581 = vmatprep.mubr.f32.mxu0 0.0
        %582 = vmatmul.mubr.f32.gmra.mxu0 %v460
        %v583 = vpop.f32.mrf.mxu0
        %v584 = vadd.f32 %v441, %v583
        %v585 = vpop.f32.mrf.mxu0
        %586 = vmatprep.mubr.f32.mxu0 0.0
        %587 = vmatmul.mubr.f32.gmra.mxu0 %v463
        %v588 = vpop.f32.mrf.mxu0
        %v589 = vadd.f32 %v441, %v588
        %v590 = vpop.f32.mrf.mxu0
        %591 = vmatprep.mubr.f32.mxu0 0.0
        %592 = vmatmul.mubr.f32.gmra.mxu0 %v466
        %v593 = vpop.f32.mrf.mxu0
        %v594 = vadd.f32 %v441, %v593
        %v595 = vpop.f32.mrf.mxu0
        %596 = vmatprep.mubr.f32.mxu0 0.0
        %597 = vmatmul.mubr.f32.gmra.mxu0 %v469
        %v598 = vpop.f32.mrf.mxu0
        %v599 = vadd.f32 %v441, %v598
        %v600 = vpop.f32.mrf.mxu0
        %601 = vmatprep.mubr.f32.mxu0 0.0
        %602 = vmatmul.mubr.f32.gmra.mxu0 %v472
        %v603 = vpop.f32.mrf.mxu0
        %v604 = vadd.f32 %v441, %v603
        %v605 = vpop.f32.mrf.mxu0
        %606 = vmatprep.mubr.f32.mxu0 0.0
        %607 = vmatmul.mubr.f32.gmra.mxu0 %v475
        %v608 = vpop.f32.mrf.mxu0
        %v609 = vadd.f32 %v441, %v608
        %v610 = vpop.f32.mrf.mxu0
        %611 = vmatprep.mubr.f32.mxu0 0.0
        %612 = vmatmul.mubr.f32.gmra.mxu0 %v478
        %v613 = vpop.f32.mrf.mxu0
        %v614 = vadd.f32 %v441, %v613
        %v615 = vpop.f32.mrf.mxu0
        %616 = vmatprep.mubr.f32.mxu0 0.0
        %617 = vmatmul.mubr.f32.gmra.mxu0 %v481
        %v618 = vpop.f32.mrf.mxu0
        %v619 = vadd.f32 %v441, %v618
        %v620 = vpop.f32.mrf.mxu0
        %621 = vmatprep.mubr.f32.mxu0 0.0
        %622 = vmatmul.mubr.f32.gmra.mxu0 %v484
        %v623 = vpop.f32.mrf.mxu0
        %v624 = vadd.f32 %v441, %v623
        %v625 = vpop.f32.mrf.mxu0
        %626 = vmatprep.mubr.f32.mxu0 0.0
        %627 = vmatmul.mubr.f32.gmra.mxu0 %v487
        %v628 = vpop.f32.mrf.mxu0
        %v629 = vadd.f32 %v441, %v628
        %v630 = vpop.f32.mrf.mxu0
        %631 = vmatprep.mubr.f32.mxu0 0.0
        %632 = vmatmul.mubr.f32.gmra.mxu0 %v490
        %v633 = vpop.f32.mrf.mxu0
        %v634 = vadd.f32 %v441, %v633
        %v635 = vpop.f32.mrf.mxu0
        %636 = vdwg.mxu0
        %v637 = vtanh.pop %v559
        %v638 = vtanh.pop %v564
        %v639 = vtanh.pop %v569
        %v640 = vtanh.pop %v574
        %v641 = vtanh.pop %v579
        %v642 = vtanh.pop %v584
        %v643 = vtanh.pop %v589
        %v644 = vtanh.pop %v594
        %v645 = vtanh.pop %v599
        %v646 = vtanh.pop %v604
        %v647 = vtanh.pop %v609
        %v648 = vtanh.pop %v614
        %v649 = vtanh.pop %v619
        %v650 = vtanh.pop %v624
        %v651 = vtanh.pop %v629
        %v652 = vtanh.pop %v634
        %v653 = vmul.f32 %v637, %v637
        %v654 = vmul.f32 %v638, %v638
        %v655 = vmul.f32 %v639, %v639
        %v656 = vmul.f32 %v640, %v640
        %v657 = vmul.f32 %v641, %v641
        %v658 = vmul.f32 %v642, %v642
        %v659 = vmul.f32 %v643, %v643
        %v660 = vmul.f32 %v644, %v644
        %v661 = vmul.f32 %v645, %v645
        %v662 = vmul.f32 %v646, %v646
        %v663 = vmul.f32 %v647, %v647
        %v664 = vmul.f32 %v648, %v648
        %v665 = vmul.f32 %v649, %v649
        %v666 = vmul.f32 %v650, %v650
        %v667 = vmul.f32 %v651, %v651
        %v668 = vmul.f32 %v652, %v652
        %v669 = vsub.f32 1.0, %v653
        %v670 = vsub.f32 1.0, %v654
        %v671 = vsub.f32 1.0, %v655
        %v672 = vsub.f32 1.0, %v656
        %v673 = vsub.f32 1.0, %v657
        %v674 = vsub.f32 1.0, %v658
        %v675 = vsub.f32 1.0, %v659
        %v676 = vsub.f32 1.0, %v660
        %v677 = vsub.f32 1.0, %v661
        %v678 = vsub.f32 1.0, %v662
        %v679 = vsub.f32 1.0, %v663
        %v680 = vsub.f32 1.0, %v664
        %v681 = vsub.f32 1.0, %v665
        %v682 = vsub.f32 1.0, %v666
        %v683 = vsub.f32 1.0, %v667
        %v684 = vsub.f32 1.0, %v668
        %v685 = vld [vmem:[%s2] sm:$0xff]
        %v686 = vld [vmem:[%s2 + $0x8] sm:$0xff]
        %v687 = vld [vmem:[%s2 + $0x10] sm:$0xff]
        %v688 = vld [vmem:[%s2 + $0x18] sm:$0xff]
        %v689 = vld [vmem:[%s2 + $0x20] sm:$0xff]
        %v690 = vld [vmem:[%s2 + $0x28] sm:$0xff]
        %v691 = vld [vmem:[%s2 + $0x30] sm:$0xff]
        %v692 = vld [vmem:[%s2 + $0x38] sm:$0xff]
        %v693 = vld [vmem:[%s5] sm:$0x1]
        %v695 = vlaneseq
        %v696 = vshrl.u32 %v695, 7
        %v697 = vsub.s32 0, %v696
        %v698 = vrot.slane %v693, %v697
        %vm700 = vcmask 523264
        %v702 = vsel %vm700, %v637, 0
        %v705 = vsel %vm700, %v638, 0
        %v708 = vsel %vm700, %v639, 0
        %v711 = vsel %vm700, %v640, 0
        %v714 = vsel %vm700, %v641, 0
        %v717 = vsel %vm700, %v642, 0
        %v720 = vsel %vm700, %v643, 0
        %v723 = vsel %vm700, %v644, 0
        %v726 = vsel %vm700, %v645, 0
        %v729 = vsel %vm700, %v646, 0
        %v732 = vsel %vm700, %v647, 0
        %v735 = vsel %vm700, %v648, 0
        %v738 = vsel %vm700, %v649, 0
        %v741 = vsel %vm700, %v650, 0
        %v744 = vsel %vm700, %v651, 0
        %v747 = vsel %vm700, %v652, 0
        %749 = vmatprep.subr.mxu0 0.0
        %750 = vmatpush1.msra.mxu0 0.0
        %751 = vmatprep.subr.mxu0 0.0
        %752 = vmatpush1.msra.mxu0 0.0
        %753 = vmatprep.subr.mxu0 0.0
        %754 = vmatpush1.msra.mxu0 0.0
        %755 = vmatprep.subr.mxu0 0.0
        %756 = vmatpush1.msra.mxu0 0.0
        %757 = vmatprep.subr.mxu0 0.0
        %758 = vmatpush1.msra.mxu0 0.0
        %759 = vmatprep.subr.mxu0 0.0
        %760 = vmatpush1.msra.mxu0 0.0
        %761 = vmatprep.subr.mxu0 0.0
        %762 = vmatpush1.msra.mxu0 0.0
        %763 = vmatprep.subr.mxu0 0.0
        %764 = vmatpush1.msra.mxu0 0.0
        %765 = vmatprep.subr.mxu0 0.0
        %766 = vmatpush1.msra.mxu0 %v692
        %767 = vmatprep.subr.mxu0 0.0
        %768 = vmatpush1.msra.mxu0 %v691
        %769 = vmatprep.subr.mxu0 0.0
        %770 = vmatpush1.msra.mxu0 %v690
        %771 = vmatprep.subr.mxu0 0.0
        %772 = vmatpush1.msra.mxu0 %v689
        %773 = vmatprep.subr.mxu0 0.0
        %774 = vmatpush1.msra.mxu0 %v688
        %775 = vmatprep.subr.mxu0 0.0
        %776 = vmatpush1.msra.mxu0 %v687
        %777 = vmatprep.subr.mxu0 0.0
        %778 = vmatpush1.msra.mxu0 %v686
        %779 = vmatprep.subr.mxu0 0.0
        %780 = vmatpush1.msra.mxu0 %v685
        %781 = vmatprep.subr.mxu0 0.0
        %782 = vmatpush2.msra.mxu0 0.0
        %783 = vmatprep.subr.mxu0 0.0
        %784 = vmatpush2.msra.mxu0 0.0
        %785 = vmatprep.subr.mxu0 0.0
        %786 = vmatpush2.msra.mxu0 0.0
        %787 = vmatprep.subr.mxu0 0.0
        %788 = vmatpush2.msra.mxu0 0.0
        %789 = vmatprep.subr.mxu0 0.0
        %790 = vmatpush2.msra.mxu0 0.0
        %791 = vmatprep.subr.mxu0 0.0
        %792 = vmatpush2.msra.mxu0 0.0
        %793 = vmatprep.subr.mxu0 0.0
        %794 = vmatpush2.msra.mxu0 0.0
        %795 = vmatprep.subr.mxu0 0.0
        %796 = vmatpush2.msra.mxu0 0.0
        %797 = vmatprep.subr.mxu0 0.0
        %798 = vmatpush2.msra.mxu0 0.0
        %799 = vmatprep.subr.mxu0 0.0
        %800 = vmatpush2.msra.mxu0 0.0
        %801 = vmatprep.subr.mxu0 0.0
        %802 = vmatpush2.msra.mxu0 0.0
        %803 = vmatprep.subr.mxu0 0.0
        %804 = vmatpush2.msra.mxu0 0.0
        %805 = vmatprep.subr.mxu0 0.0
        %806 = vmatpush2.msra.mxu0 0.0
        %807 = vmatprep.subr.mxu0 0.0
        %808 = vmatpush2.msra.mxu0 0.0
        %809 = vmatprep.subr.mxu0 0.0
        %810 = vmatpush2.msra.mxu0 0.0
        %811 = vmatprep.subr.mxu0 0.0
        %812 = vmatpush2.msra.mxu0 0.0
        %813 = vmatprep.mubr.f32.mxu0 0.0
        %814 = vmatmul.mubr.f32.gmra.mxu0 %v702
        %v815 = vpop.f32.mrf.mxu0
        %v816 = vadd.f32 %v698, %v815
        %v817 = vpop.f32.mrf.mxu0
        %818 = vmatprep.mubr.f32.mxu0 0.0
        %819 = vmatmul.mubr.f32.gmra.mxu0 %v705
        %v820 = vpop.f32.mrf.mxu0
        %v821 = vadd.f32 %v698, %v820
        %v822 = vpop.f32.mrf.mxu0
        %823 = vmatprep.mubr.f32.mxu0 0.0
        %824 = vmatmul.mubr.f32.gmra.mxu0 %v708
        %v825 = vpop.f32.mrf.mxu0
        %v826 = vadd.f32 %v698, %v825
        %v827 = vpop.f32.mrf.mxu0
        %828 = vmatprep.mubr.f32.mxu0 0.0
        %829 = vmatmul.mubr.f32.gmra.mxu0 %v711
        %v830 = vpop.f32.mrf.mxu0
        %v831 = vadd.f32 %v698, %v830
        %v832 = vpop.f32.mrf.mxu0
        %833 = vmatprep.mubr.f32.mxu0 0.0
        %834 = vmatmul.mubr.f32.gmra.mxu0 %v714
        %v835 = vpop.f32.mrf.mxu0
        %v836 = vadd.f32 %v698, %v835
        %v837 = vpop.f32.mrf.mxu0
        %838 = vmatprep.mubr.f32.mxu0 0.0
        %839 = vmatmul.mubr.f32.gmra.mxu0 %v717
        %v840 = vpop.f32.mrf.mxu0
        %v841 = vadd.f32 %v698, %v840
        %v842 = vpop.f32.mrf.mxu0
        %843 = vmatprep.mubr.f32.mxu0 0.0
        %844 = vmatmul.mubr.f32.gmra.mxu0 %v720
        %v845 = vpop.f32.mrf.mxu0
        %v846 = vadd.f32 %v698, %v845
        %v847 = vpop.f32.mrf.mxu0
        %848 = vmatprep.mubr.f32.mxu0 0.0
        %849 = vmatmul.mubr.f32.gmra.mxu0 %v723
        %v850 = vpop.f32.mrf.mxu0
        %v851 = vadd.f32 %v698, %v850
        %v852 = vpop.f32.mrf.mxu0
        %853 = vmatprep.mubr.f32.mxu0 0.0
        %854 = vmatmul.mubr.f32.gmra.mxu0 %v726
        %v855 = vpop.f32.mrf.mxu0
        %v856 = vadd.f32 %v698, %v855
        %v857 = vpop.f32.mrf.mxu0
        %858 = vmatprep.mubr.f32.mxu0 0.0
        %859 = vmatmul.mubr.f32.gmra.mxu0 %v729
        %v860 = vpop.f32.mrf.mxu0
        %v861 = vadd.f32 %v698, %v860
        %v862 = vpop.f32.mrf.mxu0
        %863 = vmatprep.mubr.f32.mxu0 0.0
        %864 = vmatmul.mubr.f32.gmra.mxu0 %v732
        %v865 = vpop.f32.mrf.mxu0
        %v866 = vadd.f32 %v698, %v865
        %v867 = vpop.f32.mrf.mxu0
        %868 = vmatprep.mubr.f32.mxu0 0.0
        %869 = vmatmul.mubr.f32.gmra.mxu0 %v735
        %v870 = vpop.f32.mrf.mxu0
        %v871 = vadd.f32 %v698, %v870
        %v872 = vpop.f32.mrf.mxu0
        %873 = vmatprep.mubr.f32.mxu0 0.0
        %874 = vmatmul.mubr.f32.gmra.mxu0 %v738
        %v875 = vpop.f32.mrf.mxu0
        %v876 = vadd.f32 %v698, %v875
        %v877 = vpop.f32.mrf.mxu0
        %878 = vmatprep.mubr.f32.mxu0 0.0
        %879 = vmatmul.mubr.f32.gmra.mxu0 %v741
        %v880 = vpop.f32.mrf.mxu0
        %v881 = vadd.f32 %v698, %v880
        %v882 = vpop.f32.mrf.mxu0
        %883 = vmatprep.mubr.f32.mxu0 0.0
        %884 = vmatmul.mubr.f32.gmra.mxu0 %v744
        %v885 = vpop.f32.mrf.mxu0
        %v886 = vadd.f32 %v698, %v885
        %v887 = vpop.f32.mrf.mxu0
        %888 = vmatprep.mubr.f32.mxu0 0.0
        %889 = vmatmul.mubr.f32.gmra.mxu0 %v747
        %v890 = vpop.f32.mrf.mxu0
        %v891 = vadd.f32 %v698, %v890
        %v892 = vpop.f32.mrf.mxu0
        %893 = vdwg.mxu0
        %v894 = vtanh.pop %v816
        %v895 = vtanh.pop %v821
        %v896 = vtanh.pop %v826
        %v897 = vtanh.pop %v831
        %v898 = vtanh.pop %v836
        %v899 = vtanh.pop %v841
        %v900 = vtanh.pop %v846
        %v901 = vtanh.pop %v851
        %v902 = vtanh.pop %v856
        %v903 = vtanh.pop %v861
        %v904 = vtanh.pop %v866
        %v905 = vtanh.pop %v871
        %v906 = vtanh.pop %v876
        %v907 = vtanh.pop %v881
        %v908 = vtanh.pop %v886
        %v909 = vtanh.pop %v891
        %v910 = vmul.f32 %v894, %v894
        %v911 = vmul.f32 %v895, %v895
        %v912 = vmul.f32 %v896, %v896
        %v913 = vmul.f32 %v897, %v897
        %v914 = vmul.f32 %v898, %v898
        %v915 = vmul.f32 %v899, %v899
        %v916 = vmul.f32 %v900, %v900
        %v917 = vmul.f32 %v901, %v901
        %v918 = vmul.f32 %v902, %v902
        %v919 = vmul.f32 %v903, %v903
        %v920 = vmul.f32 %v904, %v904
        %v921 = vmul.f32 %v905, %v905
        %v922 = vmul.f32 %v906, %v906
        %v923 = vmul.f32 %v907, %v907
        %v924 = vmul.f32 %v908, %v908
        %v925 = vmul.f32 %v909, %v909
        %v926 = vsub.f32 1.0, %v910
        %v927 = vsub.f32 1.0, %v911
        %v928 = vsub.f32 1.0, %v912
        %v929 = vsub.f32 1.0, %v913
        %v930 = vsub.f32 1.0, %v914
        %v931 = vsub.f32 1.0, %v915
        %v932 = vsub.f32 1.0, %v916
        %v933 = vsub.f32 1.0, %v917
        %v934 = vsub.f32 1.0, %v918
        %v935 = vsub.f32 1.0, %v919
        %v936 = vsub.f32 1.0, %v920
        %v937 = vsub.f32 1.0, %v921
        %v938 = vsub.f32 1.0, %v922
        %v939 = vsub.f32 1.0, %v923
        %v940 = vsub.f32 1.0, %v924
        %v941 = vsub.f32 1.0, %v925
        %v942 = vld [vmem:[%s3] sm:$0x3]
        %v943 = vld [vmem:[%s6] sm:$0x3]
        %945 = vset.pattern.permute.xlu0 0
        %946 = vperm.xlu0 %945, %v943
        %v947 = vpop.permute.xlu0 %946
        %v950 = vsel %vm700, %v942, 0
        %v953 = vsel %vm700, %v894, 0
        %v956 = vsel %vm700, %v895, 0
        %v959 = vsel %vm700, %v896, 0
        %v962 = vsel %vm700, %v897, 0
        %v965 = vsel %vm700, %v898, 0
        %v968 = vsel %vm700, %v899, 0
        %v971 = vsel %vm700, %v900, 0
        %v974 = vsel %vm700, %v901, 0
        %v977 = vsel %vm700, %v902, 0
        %v980 = vsel %vm700, %v903, 0
        %v983 = vsel %vm700, %v904, 0
        %v986 = vsel %vm700, %v905, 0
        %v989 = vsel %vm700, %v906, 0
        %v992 = vsel %vm700, %v907, 0
        %v995 = vsel %vm700, %v908, 0
        %v998 = vsel %vm700, %v909, 0
        %1000 = vmatprep.subr.mxu0 0.0
        %1001 = vmatpush1.xpose.msra.mxu0 %v998
        %1002 = vmatprep.subr.mxu0 0.0
        %1003 = vmatpush1.xpose.msra.mxu0 %v995
        %1004 = vmatprep.subr.mxu0 0.0
        %1005 = vmatpush1.xpose.msra.mxu0 %v992
        %1006 = vmatprep.subr.mxu0 0.0
        %1007 = vmatpush1.xpose.msra.mxu0 %v989
        %1008 = vmatprep.subr.mxu0 0.0
        %1009 = vmatpush1.xpose.msra.mxu0 %v986
        %1010 = vmatprep.subr.mxu0 0.0
        %1011 = vmatpush1.xpose.msra.mxu0 %v983
        %1012 = vmatprep.subr.mxu0 0.0
        %1013 = vmatpush1.xpose.msra.mxu0 %v980
        %1014 = vmatprep.subr.mxu0 0.0
        %1015 = vmatpush1.xpose.msra.mxu0 %v977
        %1016 = vmatprep.subr.mxu0 0.0
        %1017 = vmatpush1.xpose.msra.mxu0 %v974
        %1018 = vmatprep.subr.mxu0 0.0
        %1019 = vmatpush1.xpose.msra.mxu0 %v971
        %1020 = vmatprep.subr.mxu0 0.0
        %1021 = vmatpush1.xpose.msra.mxu0 %v968
        %1022 = vmatprep.subr.mxu0 0.0
        %1023 = vmatpush1.xpose.msra.mxu0 %v965
        %1024 = vmatprep.subr.mxu0 0.0
        %1025 = vmatpush1.xpose.msra.mxu0 %v962
        %1026 = vmatprep.subr.mxu0 0.0
        %1027 = vmatpush1.xpose.msra.mxu0 %v959
        %1028 = vmatprep.subr.mxu0 0.0
        %1029 = vmatpush1.xpose.msra.mxu0 %v956
        %1030 = vmatprep.subr.mxu0 0.0
        %1031 = vmatpush1.xpose.msra.mxu0 %v953
        %1032 = vmatprep.subr.mxu0 0.0
        %1033 = vmatpush2.xpose.msra.mxu0 0.0
        %1034 = vmatprep.subr.mxu0 0.0
        %1035 = vmatpush2.xpose.msra.mxu0 0.0
        %1036 = vmatprep.subr.mxu0 0.0
        %1037 = vmatpush2.xpose.msra.mxu0 0.0
        %1038 = vmatprep.subr.mxu0 0.0
        %1039 = vmatpush2.xpose.msra.mxu0 0.0
        %1040 = vmatprep.subr.mxu0 0.0
        %1041 = vmatpush2.xpose.msra.mxu0 0.0
        %1042 = vmatprep.subr.mxu0 0.0
        %1043 = vmatpush2.xpose.msra.mxu0 0.0
        %1044 = vmatprep.subr.mxu0 0.0
        %1045 = vmatpush2.xpose.msra.mxu0 0.0
        %1046 = vmatprep.subr.mxu0 0.0
        %1047 = vmatpush2.xpose.msra.mxu0 0.0
        %1048 = vmatprep.subr.mxu0 0.0
        %1049 = vmatpush2.xpose.msra.mxu0 0.0
        %1050 = vmatprep.subr.mxu0 0.0
        %1051 = vmatpush2.xpose.msra.mxu0 0.0
        %1052 = vmatprep.subr.mxu0 0.0
        %1053 = vmatpush2.xpose.msra.mxu0 0.0
        %1054 = vmatprep.subr.mxu0 0.0
        %1055 = vmatpush2.xpose.msra.mxu0 0.0
        %1056 = vmatprep.subr.mxu0 0.0
        %1057 = vmatpush2.xpose.msra.mxu0 0.0
        %1058 = vmatprep.subr.mxu0 0.0
        %1059 = vmatpush2.xpose.msra.mxu0 0.0
        %1060 = vmatprep.subr.mxu0 0.0
        %1061 = vmatpush2.xpose.msra.mxu0 0.0
        %1062 = vmatprep.subr.mxu0 0.0
        %1063 = vmatpush2.xpose.msra.mxu0 0.0
        %1064 = vmatprep.mubr.f32.mxu0 0.0
        %1065 = vmatmul.mubr.f32.gmra.mxu0 %v950
        %v1066 = vpop.f32.mrf.mxu0
        %v1067 = vadd.f32 %v947, %v1066
        %v1068 = vpop.f32.mrf.mxu0
        %1069 = vdwg.mxu0
        %v1070 = vlaneseq
        %v1071 = vshrl.u32 %v1070, 7
        %v1072 = vsub.s32 0, %v1071
        %v1073 = vrot.slane %v942, %v1072
        %v1074 = vmul.f32 %v1073, %v926
        %v1075 = vmul.f32 %v1073, %v927
        %v1076 = vmul.f32 %v1073, %v928
        %v1077 = vmul.f32 %v1073, %v929
        %v1078 = vmul.f32 %v1073, %v930
        %v1079 = vmul.f32 %v1073, %v931
        %v1080 = vmul.f32 %v1073, %v932
        %v1081 = vmul.f32 %v1073, %v933
        %v1082 = vmul.f32 %v1073, %v934
        %v1083 = vmul.f32 %v1073, %v935
        %v1084 = vmul.f32 %v1073, %v936
        %v1085 = vmul.f32 %v1073, %v937
        %v1086 = vmul.f32 %v1073, %v938
        %v1087 = vmul.f32 %v1073, %v939
        %v1088 = vmul.f32 %v1073, %v940
        %v1089 = vmul.f32 %v1073, %v941
        %v1090 = vlaneseq
        %v1091 = vshrl.u32 %v1090, 7
        %v1092 = vsub.s32 1, %v1091
        %v1093 = vrot.slane %v942, %v1092
        %v1094 = vmul.f32 %v1093, %v926
        %v1095 = vmul.f32 %v1093, %v927
        %v1096 = vmul.f32 %v1093, %v928
        %v1097 = vmul.f32 %v1093, %v929
        %v1098 = vmul.f32 %v1093, %v930
        %v1099 = vmul.f32 %v1093, %v931
        %v1100 = vmul.f32 %v1093, %v932
        %v1101 = vmul.f32 %v1093, %v933
        %v1102 = vmul.f32 %v1093, %v934
        %v1103 = vmul.f32 %v1093, %v935
        %v1104 = vmul.f32 %v1093, %v936
        %v1105 = vmul.f32 %v1093, %v937
        %v1106 = vmul.f32 %v1093, %v938
        %v1107 = vmul.f32 %v1093, %v939
        %v1108 = vmul.f32 %v1093, %v940
        %v1109 = vmul.f32 %v1093, %v941
        %v1111 = vsel %vm700, %v1074, 0
        %v1114 = vsel %vm700, %v1075, 0
        %v1117 = vsel %vm700, %v1076, 0
        %v1120 = vsel %vm700, %v1077, 0
        %v1123 = vsel %vm700, %v1078, 0
        %v1126 = vsel %vm700, %v1079, 0
        %v1129 = vsel %vm700, %v1080, 0
        %v1132 = vsel %vm700, %v1081, 0
        %v1135 = vsel %vm700, %v1082, 0
        %v1138 = vsel %vm700, %v1083, 0
        %v1141 = vsel %vm700, %v1084, 0
        %v1144 = vsel %vm700, %v1085, 0
        %v1147 = vsel %vm700, %v1086, 0
        %v1150 = vsel %vm700, %v1087, 0
        %v1153 = vsel %vm700, %v1088, 0
        %v1156 = vsel %vm700, %v1089, 0
        %v1159 = vsel %vm700, %v1094, 0
        %v1162 = vsel %vm700, %v1095, 0
        %v1165 = vsel %vm700, %v1096, 0
        %v1168 = vsel %vm700, %v1097, 0
        %v1171 = vsel %vm700, %v1098, 0
        %v1174 = vsel %vm700, %v1099, 0
        %v1177 = vsel %vm700, %v1100, 0
        %v1180 = vsel %vm700, %v1101, 0
        %v1183 = vsel %vm700, %v1102, 0
        %v1186 = vsel %vm700, %v1103, 0
        %v1189 = vsel %vm700, %v1104, 0
        %v1192 = vsel %vm700, %v1105, 0
        %v1195 = vsel %vm700, %v1106, 0
        %v1198 = vsel %vm700, %v1107, 0
        %v1201 = vsel %vm700, %v1108, 0
        %v1204 = vsel %vm700, %v1109, 0
        %v1207 = vsel %vm700, %v685, 0
        %v1210 = vsel %vm700, %v686, 0
        %v1213 = vsel %vm700, %v687, 0
        %v1216 = vsel %vm700, %v688, 0
        %v1219 = vsel %vm700, %v689, 0
        %v1222 = vsel %vm700, %v690, 0
        %v1225 = vsel %vm700, %v691, 0
        %v1228 = vsel %vm700, %v692, 0
        %1230 = vmatprep.subr.mxu0 0.0
        %1231 = vmatpush1.xpose.msra.mxu0 0.0
        %1232 = vmatprep.subr.mxu0 0.0
        %1233 = vmatpush1.xpose.msra.mxu0 0.0
        %1234 = vmatprep.subr.mxu0 0.0
        %1235 = vmatpush1.xpose.msra.mxu0 0.0
        %1236 = vmatprep.subr.mxu0 0.0
        %1237 = vmatpush1.xpose.msra.mxu0 0.0
        %1238 = vmatprep.subr.mxu0 0.0
        %1239 = vmatpush1.xpose.msra.mxu0 0.0
        %1240 = vmatprep.subr.mxu0 0.0
        %1241 = vmatpush1.xpose.msra.mxu0 0.0
        %1242 = vmatprep.subr.mxu0 0.0
        %1243 = vmatpush1.xpose.msra.mxu0 0.0
        %1244 = vmatprep.subr.mxu0 0.0
        %1245 = vmatpush1.xpose.msra.mxu0 0.0
        %1246 = vmatprep.subr.mxu0 0.0
        %1247 = vmatpush1.xpose.msra.mxu0 %v1228
        %1248 = vmatprep.subr.mxu0 0.0
        %1249 = vmatpush1.xpose.msra.mxu0 %v1225
        %1250 = vmatprep.subr.mxu0 0.0
        %1251 = vmatpush1.xpose.msra.mxu0 %v1222
        %1252 = vmatprep.subr.mxu0 0.0
        %1253 = vmatpush1.xpose.msra.mxu0 %v1219
        %1254 = vmatprep.subr.mxu0 0.0
        %1255 = vmatpush1.xpose.msra.mxu0 %v1216
        %1256 = vmatprep.subr.mxu0 0.0
        %1257 = vmatpush1.xpose.msra.mxu0 %v1213
        %1258 = vmatprep.subr.mxu0 0.0
        %1259 = vmatpush1.xpose.msra.mxu0 %v1210
        %1260 = vmatprep.subr.mxu0 0.0
        %1261 = vmatpush1.xpose.msra.mxu0 %v1207
        %1262 = vmatprep.subr.mxu0 0.0
        %1263 = vmatpush2.xpose.msra.mxu0 0.0
        %1264 = vmatprep.subr.mxu0 0.0
        %1265 = vmatpush2.xpose.msra.mxu0 0.0
        %1266 = vmatprep.subr.mxu0 0.0
        %1267 = vmatpush2.xpose.msra.mxu0 0.0
        %1268 = vmatprep.subr.mxu0 0.0
        %1269 = vmatpush2.xpose.msra.mxu0 0.0
        %1270 = vmatprep.subr.mxu0 0.0
        %1271 = vmatpush2.xpose.msra.mxu0 0.0
        %1272 = vmatprep.subr.mxu0 0.0
        %1273 = vmatpush2.xpose.msra.mxu0 0.0
        %1274 = vmatprep.subr.mxu0 0.0
        %1275 = vmatpush2.xpose.msra.mxu0 0.0
        %1276 = vmatprep.subr.mxu0 0.0
        %1277 = vmatpush2.xpose.msra.mxu0 0.0
        %1278 = vmatprep.subr.mxu0 0.0
        %1279 = vmatpush2.xpose.msra.mxu0 0.0
        %1280 = vmatprep.subr.mxu0 0.0
        %1281 = vmatpush2.xpose.msra.mxu0 0.0
        %1282 = vmatprep.subr.mxu0 0.0
        %1283 = vmatpush2.xpose.msra.mxu0 0.0
        %1284 = vmatprep.subr.mxu0 0.0
        %1285 = vmatpush2.xpose.msra.mxu0 0.0
        %1286 = vmatprep.subr.mxu0 0.0
        %1287 = vmatpush2.xpose.msra.mxu0 0.0
        %1288 = vmatprep.subr.mxu0 0.0
        %1289 = vmatpush2.xpose.msra.mxu0 0.0
        %1290 = vmatprep.subr.mxu0 0.0
        %1291 = vmatpush2.xpose.msra.mxu0 0.0
        %1292 = vmatprep.subr.mxu0 0.0
        %1293 = vmatpush2.xpose.msra.mxu0 0.0
        %1294 = vmatprep.mubr.f32.mxu0 0.0
        %1295 = vmatmul.mubr.f32.gmra.mxu0 %v1111
        %v1296 = vpop.f32.mrf.mxu0
        %v1297 = vadd.f32 0.0, %v1296
        %v1298 = vpop.f32.mrf.mxu0
        %1299 = vmatprep.mubr.f32.mxu0 0.0
        %1300 = vmatmul.mubr.f32.gmra.mxu0 %v1114
        %v1301 = vpop.f32.mrf.mxu0
        %v1302 = vadd.f32 0.0, %v1301
        %v1303 = vpop.f32.mrf.mxu0
        %1304 = vmatprep.mubr.f32.mxu0 0.0
        %1305 = vmatmul.mubr.f32.gmra.mxu0 %v1117
        %v1306 = vpop.f32.mrf.mxu0
        %v1307 = vadd.f32 0.0, %v1306
        %v1308 = vpop.f32.mrf.mxu0
        %1309 = vmatprep.mubr.f32.mxu0 0.0
        %1310 = vmatmul.mubr.f32.gmra.mxu0 %v1120
        %v1311 = vpop.f32.mrf.mxu0
        %v1312 = vadd.f32 0.0, %v1311
        %v1313 = vpop.f32.mrf.mxu0
        %1314 = vmatprep.mubr.f32.mxu0 0.0
        %1315 = vmatmul.mubr.f32.gmra.mxu0 %v1123
        %v1316 = vpop.f32.mrf.mxu0
        %v1317 = vadd.f32 0.0, %v1316
        %v1318 = vpop.f32.mrf.mxu0
        %1319 = vmatprep.mubr.f32.mxu0 0.0
        %1320 = vmatmul.mubr.f32.gmra.mxu0 %v1126
        %v1321 = vpop.f32.mrf.mxu0
        %v1322 = vadd.f32 0.0, %v1321
        %v1323 = vpop.f32.mrf.mxu0
        %1324 = vmatprep.mubr.f32.mxu0 0.0
        %1325 = vmatmul.mubr.f32.gmra.mxu0 %v1129
        %v1326 = vpop.f32.mrf.mxu0
        %v1327 = vadd.f32 0.0, %v1326
        %v1328 = vpop.f32.mrf.mxu0
        %1329 = vmatprep.mubr.f32.mxu0 0.0
        %1330 = vmatmul.mubr.f32.gmra.mxu0 %v1132
        %v1331 = vpop.f32.mrf.mxu0
        %v1332 = vadd.f32 0.0, %v1331
        %v1333 = vpop.f32.mrf.mxu0
        %1334 = vmatprep.mubr.f32.mxu0 0.0
        %1335 = vmatmul.mubr.f32.gmra.mxu0 %v1135
        %v1336 = vpop.f32.mrf.mxu0
        %v1337 = vadd.f32 0.0, %v1336
        %v1338 = vpop.f32.mrf.mxu0
        %1339 = vmatprep.mubr.f32.mxu0 0.0
        %1340 = vmatmul.mubr.f32.gmra.mxu0 %v1138
        %v1341 = vpop.f32.mrf.mxu0
        %v1342 = vadd.f32 0.0, %v1341
        %v1343 = vpop.f32.mrf.mxu0
        %1344 = vmatprep.mubr.f32.mxu0 0.0
        %1345 = vmatmul.mubr.f32.gmra.mxu0 %v1141
        %v1346 = vpop.f32.mrf.mxu0
        %v1347 = vadd.f32 0.0, %v1346
        %v1348 = vpop.f32.mrf.mxu0
        %1349 = vmatprep.mubr.f32.mxu0 0.0
        %1350 = vmatmul.mubr.f32.gmra.mxu0 %v1144
        %v1351 = vpop.f32.mrf.mxu0
        %v1352 = vadd.f32 0.0, %v1351
        %v1353 = vpop.f32.mrf.mxu0
        %1354 = vmatprep.mubr.f32.mxu0 0.0
        %1355 = vmatmul.mubr.f32.gmra.mxu0 %v1147
        %v1356 = vpop.f32.mrf.mxu0
        %v1357 = vadd.f32 0.0, %v1356
        %v1358 = vpop.f32.mrf.mxu0
        %1359 = vmatprep.mubr.f32.mxu0 0.0
        %1360 = vmatmul.mubr.f32.gmra.mxu0 %v1150
        %v1361 = vpop.f32.mrf.mxu0
        %v1362 = vadd.f32 0.0, %v1361
        %v1363 = vpop.f32.mrf.mxu0
        %1364 = vmatprep.mubr.f32.mxu0 0.0
        %1365 = vmatmul.mubr.f32.gmra.mxu0 %v1153
        %v1366 = vpop.f32.mrf.mxu0
        %v1367 = vadd.f32 0.0, %v1366
        %v1368 = vpop.f32.mrf.mxu0
        %1369 = vmatprep.mubr.f32.mxu0 0.0
        %1370 = vmatmul.mubr.f32.gmra.mxu0 %v1156
        %v1371 = vpop.f32.mrf.mxu0
        %v1372 = vadd.f32 0.0, %v1371
        %v1373 = vpop.f32.mrf.mxu0
        %1374 = vmatprep.mubr.f32.mxu0 0.0
        %1375 = vmatmul.mubr.f32.gmra.mxu0 %v1159
        %v1376 = vpop.f32.mrf.mxu0
        %v1377 = vadd.f32 0.0, %v1376
        %v1378 = vpop.f32.mrf.mxu0
        %1379 = vmatprep.mubr.f32.mxu0 0.0
        %1380 = vmatmul.mubr.f32.gmra.mxu0 %v1162
        %v1381 = vpop.f32.mrf.mxu0
        %v1382 = vadd.f32 0.0, %v1381
        %v1383 = vpop.f32.mrf.mxu0
        %1384 = vmatprep.mubr.f32.mxu0 0.0
        %1385 = vmatmul.mubr.f32.gmra.mxu0 %v1165
        %v1386 = vpop.f32.mrf.mxu0
        %v1387 = vadd.f32 0.0, %v1386
        %v1388 = vpop.f32.mrf.mxu0
        %1389 = vmatprep.mubr.f32.mxu0 0.0
        %1390 = vmatmul.mubr.f32.gmra.mxu0 %v1168
        %v1391 = vpop.f32.mrf.mxu0
        %v1392 = vadd.f32 0.0, %v1391
        %v1393 = vpop.f32.mrf.mxu0
        %1394 = vmatprep.mubr.f32.mxu0 0.0
        %1395 = vmatmul.mubr.f32.gmra.mxu0 %v1171
        %v1396 = vpop.f32.mrf.mxu0
        %v1397 = vadd.f32 0.0, %v1396
        %v1398 = vpop.f32.mrf.mxu0
        %1399 = vmatprep.mubr.f32.mxu0 0.0
        %1400 = vmatmul.mubr.f32.gmra.mxu0 %v1174
        %v1401 = vpop.f32.mrf.mxu0
        %v1402 = vadd.f32 0.0, %v1401
        %v1403 = vpop.f32.mrf.mxu0
        %1404 = vmatprep.mubr.f32.mxu0 0.0
        %1405 = vmatmul.mubr.f32.gmra.mxu0 %v1177
        %v1406 = vpop.f32.mrf.mxu0
        %v1407 = vadd.f32 0.0, %v1406
        %v1408 = vpop.f32.mrf.mxu0
        %1409 = vmatprep.mubr.f32.mxu0 0.0
        %1410 = vmatmul.mubr.f32.gmra.mxu0 %v1180
        %v1411 = vpop.f32.mrf.mxu0
        %v1412 = vadd.f32 0.0, %v1411
        %v1413 = vpop.f32.mrf.mxu0
        %1414 = vmatprep.mubr.f32.mxu0 0.0
        %1415 = vmatmul.mubr.f32.gmra.mxu0 %v1183
        %v1416 = vpop.f32.mrf.mxu0
        %v1417 = vadd.f32 0.0, %v1416
        %v1418 = vpop.f32.mrf.mxu0
        %1419 = vmatprep.mubr.f32.mxu0 0.0
        %1420 = vmatmul.mubr.f32.gmra.mxu0 %v1186
        %v1421 = vpop.f32.mrf.mxu0
        %v1422 = vadd.f32 0.0, %v1421
        %v1423 = vpop.f32.mrf.mxu0
        %1424 = vmatprep.mubr.f32.mxu0 0.0
        %1425 = vmatmul.mubr.f32.gmra.mxu0 %v1189
        %v1426 = vpop.f32.mrf.mxu0
        %v1427 = vadd.f32 0.0, %v1426
        %v1428 = vpop.f32.mrf.mxu0
        %1429 = vmatprep.mubr.f32.mxu0 0.0
        %1430 = vmatmul.mubr.f32.gmra.mxu0 %v1192
        %v1431 = vpop.f32.mrf.mxu0
        %v1432 = vadd.f32 0.0, %v1431
        %v1433 = vpop.f32.mrf.mxu0
        %1434 = vmatprep.mubr.f32.mxu0 0.0
        %1435 = vmatmul.mubr.f32.gmra.mxu0 %v1195
        %v1436 = vpop.f32.mrf.mxu0
        %v1437 = vadd.f32 0.0, %v1436
        %v1438 = vpop.f32.mrf.mxu0
        %1439 = vmatprep.mubr.f32.mxu0 0.0
        %1440 = vmatmul.mubr.f32.gmra.mxu0 %v1198
        %v1441 = vpop.f32.mrf.mxu0
        %v1442 = vadd.f32 0.0, %v1441
        %v1443 = vpop.f32.mrf.mxu0
        %1444 = vmatprep.mubr.f32.mxu0 0.0
        %1445 = vmatmul.mubr.f32.gmra.mxu0 %v1201
        %v1446 = vpop.f32.mrf.mxu0
        %v1447 = vadd.f32 0.0, %v1446
        %v1448 = vpop.f32.mrf.mxu0
        %1449 = vmatprep.mubr.f32.mxu0 0.0
        %1450 = vmatmul.mubr.f32.gmra.mxu0 %v1204
        %v1451 = vpop.f32.mrf.mxu0
        %v1452 = vadd.f32 0.0, %v1451
        %v1453 = vpop.f32.mrf.mxu0
        %1454 = vdwg.mxu0
        %v1455 = vmul.f32 %v1297, %v669
        %v1456 = vmul.f32 %v1302, %v670
        %v1457 = vmul.f32 %v1307, %v671
        %v1458 = vmul.f32 %v1312, %v672
        %v1459 = vmul.f32 %v1317, %v673
        %v1460 = vmul.f32 %v1322, %v674
        %v1461 = vmul.f32 %v1327, %v675
        %v1462 = vmul.f32 %v1332, %v676
        %v1463 = vmul.f32 %v1337, %v677
        %v1464 = vmul.f32 %v1342, %v678
        %v1465 = vmul.f32 %v1347, %v679
        %v1466 = vmul.f32 %v1352, %v680
        %v1467 = vmul.f32 %v1357, %v681
        %v1468 = vmul.f32 %v1362, %v682
        %v1469 = vmul.f32 %v1367, %v683
        %v1470 = vmul.f32 %v1372, %v684
        %v1471 = vmul.f32 %v1377, %v669
        %v1472 = vmul.f32 %v1382, %v670
        %v1473 = vmul.f32 %v1387, %v671
        %v1474 = vmul.f32 %v1392, %v672
        %v1475 = vmul.f32 %v1397, %v673
        %v1476 = vmul.f32 %v1402, %v674
        %v1477 = vmul.f32 %v1407, %v675
        %v1478 = vmul.f32 %v1412, %v676
        %v1479 = vmul.f32 %v1417, %v677
        %v1480 = vmul.f32 %v1422, %v678
        %v1481 = vmul.f32 %v1427, %v679
        %v1482 = vmul.f32 %v1432, %v680
        %v1483 = vmul.f32 %v1437, %v681
        %v1484 = vmul.f32 %v1442, %v682
        %v1485 = vmul.f32 %v1447, %v683
        %v1486 = vmul.f32 %v1452, %v684
        %v1487 = vld [vmem:[%s7] sm:$0xff]
        %v1488 = vld [vmem:[%s7 + $0x8] sm:$0xff]
        %v1489 = vld [vmem:[%s7 + $0x10] sm:$0xff]
        %v1490 = vld [vmem:[%s7 + $0x18] sm:$0xff]
        %v1492 = vsel %vm700, %v1455, 0
        %v1495 = vsel %vm700, %v1456, 0
        %v1498 = vsel %vm700, %v1457, 0
        %v1501 = vsel %vm700, %v1458, 0
        %v1504 = vsel %vm700, %v1459, 0
        %v1507 = vsel %vm700, %v1460, 0
        %v1510 = vsel %vm700, %v1461, 0
        %v1513 = vsel %vm700, %v1462, 0
        %v1516 = vsel %vm700, %v1463, 0
        %v1519 = vsel %vm700, %v1464, 0
        %v1522 = vsel %vm700, %v1465, 0
        %v1525 = vsel %vm700, %v1466, 0
        %v1528 = vsel %vm700, %v1467, 0
        %v1531 = vsel %vm700, %v1468, 0
        %v1534 = vsel %vm700, %v1469, 0
        %v1537 = vsel %vm700, %v1470, 0
        %v1540 = vsel %vm700, %v1471, 0
        %v1543 = vsel %vm700, %v1472, 0
        %v1546 = vsel %vm700, %v1473, 0
        %v1549 = vsel %vm700, %v1474, 0
        %v1552 = vsel %vm700, %v1475, 0
        %v1555 = vsel %vm700, %v1476, 0
        %v1558 = vsel %vm700, %v1477, 0
        %v1561 = vsel %vm700, %v1478, 0
        %v1564 = vsel %vm700, %v1479, 0
        %v1567 = vsel %vm700, %v1480, 0
        %v1570 = vsel %vm700, %v1481, 0
        %v1573 = vsel %vm700, %v1482, 0
        %v1576 = vsel %vm700, %v1483, 0
        %v1579 = vsel %vm700, %v1484, 0
        %v1582 = vsel %vm700, %v1485, 0
        %v1585 = vsel %vm700, %v1486, 0
        %v1588 = vsel %vm700, %v1487, 0
        %v1591 = vsel %vm700, %v1488, 0
        %v1594 = vsel %vm700, %v1489, 0
        %v1597 = vsel %vm700, %v1490, 0
        %1599 = vmatprep.subr.mxu0 0.0
        %1600 = vmatpush1.xpose.msra.mxu0 0.0
        %1601 = vmatprep.subr.mxu0 0.0
        %1602 = vmatpush1.xpose.msra.mxu0 0.0
        %1603 = vmatprep.subr.mxu0 0.0
        %1604 = vmatpush1.xpose.msra.mxu0 0.0
        %1605 = vmatprep.subr.mxu0 0.0
        %1606 = vmatpush1.xpose.msra.mxu0 0.0
        %1607 = vmatprep.subr.mxu0 0.0
        %1608 = vmatpush1.xpose.msra.mxu0 0.0
        %1609 = vmatprep.subr.mxu0 0.0
        %1610 = vmatpush1.xpose.msra.mxu0 0.0
        %1611 = vmatprep.subr.mxu0 0.0
        %1612 = vmatpush1.xpose.msra.mxu0 0.0
        %1613 = vmatprep.subr.mxu0 0.0
        %1614 = vmatpush1.xpose.msra.mxu0 0.0
        %1615 = vmatprep.subr.mxu0 0.0
        %1616 = vmatpush1.xpose.msra.mxu0 0.0
        %1617 = vmatprep.subr.mxu0 0.0
        %1618 = vmatpush1.xpose.msra.mxu0 0.0
        %1619 = vmatprep.subr.mxu0 0.0
        %1620 = vmatpush1.xpose.msra.mxu0 0.0
        %1621 = vmatprep.subr.mxu0 0.0
        %1622 = vmatpush1.xpose.msra.mxu0 0.0
        %1623 = vmatprep.subr.mxu0 0.0
        %1624 = vmatpush1.xpose.msra.mxu0 %v1597
        %1625 = vmatprep.subr.mxu0 0.0
        %1626 = vmatpush1.xpose.msra.mxu0 %v1594
        %1627 = vmatprep.subr.mxu0 0.0
        %1628 = vmatpush1.xpose.msra.mxu0 %v1591
        %1629 = vmatprep.subr.mxu0 0.0
        %1630 = vmatpush1.xpose.msra.mxu0 %v1588
        %1631 = vmatprep.subr.mxu0 0.0
        %1632 = vmatpush2.xpose.msra.mxu0 0.0
        %1633 = vmatprep.subr.mxu0 0.0
        %1634 = vmatpush2.xpose.msra.mxu0 0.0
        %1635 = vmatprep.subr.mxu0 0.0
        %1636 = vmatpush2.xpose.msra.mxu0 0.0
        %1637 = vmatprep.subr.mxu0 0.0
        %1638 = vmatpush2.xpose.msra.mxu0 0.0
        %1639 = vmatprep.subr.mxu0 0.0
        %1640 = vmatpush2.xpose.msra.mxu0 0.0
        %1641 = vmatprep.subr.mxu0 0.0
        %1642 = vmatpush2.xpose.msra.mxu0 0.0
        %1643 = vmatprep.subr.mxu0 0.0
        %1644 = vmatpush2.xpose.msra.mxu0 0.0
        %1645 = vmatprep.subr.mxu0 0.0
        %1646 = vmatpush2.xpose.msra.mxu0 0.0
        %1647 = vmatprep.subr.mxu0 0.0
        %1648 = vmatpush2.xpose.msra.mxu0 0.0
        %1649 = vmatprep.subr.mxu0 0.0
        %1650 = vmatpush2.xpose.msra.mxu0 0.0
        %1651 = vmatprep.subr.mxu0 0.0
        %1652 = vmatpush2.xpose.msra.mxu0 0.0
        %1653 = vmatprep.subr.mxu0 0.0
        %1654 = vmatpush2.xpose.msra.mxu0 0.0
        %1655 = vmatprep.subr.mxu0 0.0
        %1656 = vmatpush2.xpose.msra.mxu0 0.0
        %1657 = vmatprep.subr.mxu0 0.0
        %1658 = vmatpush2.xpose.msra.mxu0 0.0
        %1659 = vmatprep.subr.mxu0 0.0
        %1660 = vmatpush2.xpose.msra.mxu0 0.0
        %1661 = vmatprep.subr.mxu0 0.0
        %1662 = vmatpush2.xpose.msra.mxu0 0.0
        %1663 = vmatprep.mubr.f32.mxu0 0.0
        %1664 = vmatmul.mubr.f32.gmra.mxu0 %v1492
        %v1665 = vpop.f32.mrf.mxu0
        %v1666 = vadd.f32 0.0, %v1665
        %v1667 = vpop.f32.mrf.mxu0
        %1668 = vmatprep.mubr.f32.mxu0 0.0
        %1669 = vmatmul.mubr.f32.gmra.mxu0 %v1495
        %v1670 = vpop.f32.mrf.mxu0
        %v1671 = vadd.f32 0.0, %v1670
        %v1672 = vpop.f32.mrf.mxu0
        %1673 = vmatprep.mubr.f32.mxu0 0.0
        %1674 = vmatmul.mubr.f32.gmra.mxu0 %v1498
        %v1675 = vpop.f32.mrf.mxu0
        %v1676 = vadd.f32 0.0, %v1675
        %v1677 = vpop.f32.mrf.mxu0
        %1678 = vmatprep.mubr.f32.mxu0 0.0
        %1679 = vmatmul.mubr.f32.gmra.mxu0 %v1501
        %v1680 = vpop.f32.mrf.mxu0
        %v1681 = vadd.f32 0.0, %v1680
        %v1682 = vpop.f32.mrf.mxu0
        %1683 = vmatprep.mubr.f32.mxu0 0.0
        %1684 = vmatmul.mubr.f32.gmra.mxu0 %v1504
        %v1685 = vpop.f32.mrf.mxu0
        %v1686 = vadd.f32 0.0, %v1685
        %v1687 = vpop.f32.mrf.mxu0
        %1688 = vmatprep.mubr.f32.mxu0 0.0
        %1689 = vmatmul.mubr.f32.gmra.mxu0 %v1507
        %v1690 = vpop.f32.mrf.mxu0
        %v1691 = vadd.f32 0.0, %v1690
        %v1692 = vpop.f32.mrf.mxu0
        %1693 = vmatprep.mubr.f32.mxu0 0.0
        %1694 = vmatmul.mubr.f32.gmra.mxu0 %v1510
        %v1695 = vpop.f32.mrf.mxu0
        %v1696 = vadd.f32 0.0, %v1695
        %v1697 = vpop.f32.mrf.mxu0
        %1698 = vmatprep.mubr.f32.mxu0 0.0
        %1699 = vmatmul.mubr.f32.gmra.mxu0 %v1513
        %v1700 = vpop.f32.mrf.mxu0
        %v1701 = vadd.f32 0.0, %v1700
        %v1702 = vpop.f32.mrf.mxu0
        %1703 = vmatprep.mubr.f32.mxu0 0.0
        %1704 = vmatmul.mubr.f32.gmra.mxu0 %v1516
        %v1705 = vpop.f32.mrf.mxu0
        %v1706 = vadd.f32 0.0, %v1705
        %v1707 = vpop.f32.mrf.mxu0
        %1708 = vmatprep.mubr.f32.mxu0 0.0
        %1709 = vmatmul.mubr.f32.gmra.mxu0 %v1519
        %v1710 = vpop.f32.mrf.mxu0
        %v1711 = vadd.f32 0.0, %v1710
        %v1712 = vpop.f32.mrf.mxu0
        %1713 = vmatprep.mubr.f32.mxu0 0.0
        %1714 = vmatmul.mubr.f32.gmra.mxu0 %v1522
        %v1715 = vpop.f32.mrf.mxu0
        %v1716 = vadd.f32 0.0, %v1715
        %v1717 = vpop.f32.mrf.mxu0
        %1718 = vmatprep.mubr.f32.mxu0 0.0
        %1719 = vmatmul.mubr.f32.gmra.mxu0 %v1525
        %v1720 = vpop.f32.mrf.mxu0
        %v1721 = vadd.f32 0.0, %v1720
        %v1722 = vpop.f32.mrf.mxu0
        %1723 = vmatprep.mubr.f32.mxu0 0.0
        %1724 = vmatmul.mubr.f32.gmra.mxu0 %v1528
        %v1725 = vpop.f32.mrf.mxu0
        %v1726 = vadd.f32 0.0, %v1725
        %v1727 = vpop.f32.mrf.mxu0
        %1728 = vmatprep.mubr.f32.mxu0 0.0
        %1729 = vmatmul.mubr.f32.gmra.mxu0 %v1531
        %v1730 = vpop.f32.mrf.mxu0
        %v1731 = vadd.f32 0.0, %v1730
        %v1732 = vpop.f32.mrf.mxu0
        %1733 = vmatprep.mubr.f32.mxu0 0.0
        %1734 = vmatmul.mubr.f32.gmra.mxu0 %v1534
        %v1735 = vpop.f32.mrf.mxu0
        %v1736 = vadd.f32 0.0, %v1735
        %v1737 = vpop.f32.mrf.mxu0
        %1738 = vmatprep.mubr.f32.mxu0 0.0
        %1739 = vmatmul.mubr.f32.gmra.mxu0 %v1537
        %v1740 = vpop.f32.mrf.mxu0
        %v1741 = vadd.f32 0.0, %v1740
        %v1742 = vpop.f32.mrf.mxu0
        %1743 = vmatprep.mubr.f32.mxu0 0.0
        %1744 = vmatmul.mubr.f32.gmra.mxu0 %v1540
        %v1745 = vpop.f32.mrf.mxu0
        %v1746 = vadd.f32 0.0, %v1745
        %v1747 = vpop.f32.mrf.mxu0
        %1748 = vmatprep.mubr.f32.mxu0 0.0
        %1749 = vmatmul.mubr.f32.gmra.mxu0 %v1543
        %v1750 = vpop.f32.mrf.mxu0
        %v1751 = vadd.f32 0.0, %v1750
        %v1752 = vpop.f32.mrf.mxu0
        %1753 = vmatprep.mubr.f32.mxu0 0.0
        %1754 = vmatmul.mubr.f32.gmra.mxu0 %v1546
        %v1755 = vpop.f32.mrf.mxu0
        %v1756 = vadd.f32 0.0, %v1755
        %v1757 = vpop.f32.mrf.mxu0
        %1758 = vmatprep.mubr.f32.mxu0 0.0
        %1759 = vmatmul.mubr.f32.gmra.mxu0 %v1549
        %v1760 = vpop.f32.mrf.mxu0
        %v1761 = vadd.f32 0.0, %v1760
        %v1762 = vpop.f32.mrf.mxu0
        %1763 = vmatprep.mubr.f32.mxu0 0.0
        %1764 = vmatmul.mubr.f32.gmra.mxu0 %v1552
        %v1765 = vpop.f32.mrf.mxu0
        %v1766 = vadd.f32 0.0, %v1765
        %v1767 = vpop.f32.mrf.mxu0
        %1768 = vmatprep.mubr.f32.mxu0 0.0
        %1769 = vmatmul.mubr.f32.gmra.mxu0 %v1555
        %v1770 = vpop.f32.mrf.mxu0
        %v1771 = vadd.f32 0.0, %v1770
        %v1772 = vpop.f32.mrf.mxu0
        %1773 = vmatprep.mubr.f32.mxu0 0.0
        %1774 = vmatmul.mubr.f32.gmra.mxu0 %v1558
        %v1775 = vpop.f32.mrf.mxu0
        %v1776 = vadd.f32 0.0, %v1775
        %v1777 = vpop.f32.mrf.mxu0
        %1778 = vmatprep.mubr.f32.mxu0 0.0
        %1779 = vmatmul.mubr.f32.gmra.mxu0 %v1561
        %v1780 = vpop.f32.mrf.mxu0
        %v1781 = vadd.f32 0.0, %v1780
        %v1782 = vpop.f32.mrf.mxu0
        %1783 = vmatprep.mubr.f32.mxu0 0.0
        %1784 = vmatmul.mubr.f32.gmra.mxu0 %v1564
        %v1785 = vpop.f32.mrf.mxu0
        %v1786 = vadd.f32 0.0, %v1785
        %v1787 = vpop.f32.mrf.mxu0
        %1788 = vmatprep.mubr.f32.mxu0 0.0
        %1789 = vmatmul.mubr.f32.gmra.mxu0 %v1567
        %v1790 = vpop.f32.mrf.mxu0
        %v1791 = vadd.f32 0.0, %v1790
        %v1792 = vpop.f32.mrf.mxu0
        %1793 = vmatprep.mubr.f32.mxu0 0.0
        %1794 = vmatmul.mubr.f32.gmra.mxu0 %v1570
        %v1795 = vpop.f32.mrf.mxu0
        %v1796 = vadd.f32 0.0, %v1795
        %v1797 = vpop.f32.mrf.mxu0
        %1798 = vmatprep.mubr.f32.mxu0 0.0
        %1799 = vmatmul.mubr.f32.gmra.mxu0 %v1573
        %v1800 = vpop.f32.mrf.mxu0
        %v1801 = vadd.f32 0.0, %v1800
        %v1802 = vpop.f32.mrf.mxu0
        %1803 = vmatprep.mubr.f32.mxu0 0.0
        %1804 = vmatmul.mubr.f32.gmra.mxu0 %v1576
        %v1805 = vpop.f32.mrf.mxu0
        %v1806 = vadd.f32 0.0, %v1805
        %v1807 = vpop.f32.mrf.mxu0
        %1808 = vmatprep.mubr.f32.mxu0 0.0
        %1809 = vmatmul.mubr.f32.gmra.mxu0 %v1579
        %v1810 = vpop.f32.mrf.mxu0
        %v1811 = vadd.f32 0.0, %v1810
        %v1812 = vpop.f32.mrf.mxu0
        %1813 = vmatprep.mubr.f32.mxu0 0.0
        %1814 = vmatmul.mubr.f32.gmra.mxu0 %v1582
        %v1815 = vpop.f32.mrf.mxu0
        %v1816 = vadd.f32 0.0, %v1815
        %v1817 = vpop.f32.mrf.mxu0
        %1818 = vmatprep.mubr.f32.mxu0 0.0
        %1819 = vmatmul.mubr.f32.gmra.mxu0 %v1585
        %v1820 = vpop.f32.mrf.mxu0
        %v1821 = vadd.f32 0.0, %v1820
        %v1822 = vpop.f32.mrf.mxu0
        %1823 = vdwg.mxu0
        %v1824 = vmul.f32 %v1666, %v1666
        %v1825 = vmul.f32 %v1671, %v1671
        %v1826 = vmul.f32 %v1676, %v1676
        %v1827 = vmul.f32 %v1681, %v1681
        %v1828 = vmul.f32 %v1686, %v1686
        %v1829 = vmul.f32 %v1691, %v1691
        %v1830 = vmul.f32 %v1696, %v1696
        %v1831 = vmul.f32 %v1701, %v1701
        %v1832 = vmul.f32 %v1706, %v1706
        %v1833 = vmul.f32 %v1711, %v1711
        %v1834 = vmul.f32 %v1716, %v1716
        %v1835 = vmul.f32 %v1721, %v1721
        %v1836 = vmul.f32 %v1726, %v1726
        %v1837 = vmul.f32 %v1731, %v1731
        %v1838 = vmul.f32 %v1736, %v1736
        %v1839 = vmul.f32 %v1741, %v1741
        %v1840 = vmul.f32 %v1746, %v1746
        %v1841 = vmul.f32 %v1751, %v1751
        %v1842 = vmul.f32 %v1756, %v1756
        %v1843 = vmul.f32 %v1761, %v1761
        %v1844 = vmul.f32 %v1766, %v1766
        %v1845 = vmul.f32 %v1771, %v1771
        %v1846 = vmul.f32 %v1776, %v1776
        %v1847 = vmul.f32 %v1781, %v1781
        %v1848 = vmul.f32 %v1786, %v1786
        %v1849 = vmul.f32 %v1791, %v1791
        %v1850 = vmul.f32 %v1796, %v1796
        %v1851 = vmul.f32 %v1801, %v1801
        %v1852 = vmul.f32 %v1806, %v1806
        %v1853 = vmul.f32 %v1811, %v1811
        %v1854 = vmul.f32 %v1816, %v1816
        %v1855 = vmul.f32 %v1821, %v1821
        %v1857 = vsel %vm443, 1.0, 0
        %v1860 = vsel %vm443, %v1824, 0
        %v1863 = vsel %vm443, %v1825, 0
        %v1866 = vsel %vm443, %v1826, 0
        %v1869 = vsel %vm443, %v1827, 0
        %v1872 = vsel %vm443, %v1828, 0
        %v1875 = vsel %vm443, %v1829, 0
        %v1878 = vsel %vm443, %v1830, 0
        %v1881 = vsel %vm443, %v1831, 0
        %v1884 = vsel %vm443, %v1832, 0
        %v1887 = vsel %vm443, %v1833, 0
        %v1890 = vsel %vm443, %v1834, 0
        %v1893 = vsel %vm443, %v1835, 0
        %v1896 = vsel %vm443, %v1836, 0
        %v1899 = vsel %vm443, %v1837, 0
        %v1902 = vsel %vm443, %v1838, 0
        %v1905 = vsel %vm443, %v1839, 0
        %v1908 = vsel %vm443, %v1840, 0
        %v1911 = vsel %vm443, %v1841, 0
        %v1914 = vsel %vm443, %v1842, 0
        %v1917 = vsel %vm443, %v1843, 0
        %v1920 = vsel %vm443, %v1844, 0
        %v1923 = vsel %vm443, %v1845, 0
        %v1926 = vsel %vm443, %v1846, 0
        %v1929 = vsel %vm443, %v1847, 0
        %v1932 = vsel %vm443, %v1848, 0
        %v1935 = vsel %vm443, %v1849, 0
        %v1938 = vsel %vm443, %v1850, 0
        %v1941 = vsel %vm443, %v1851, 0
        %v1944 = vsel %vm443, %v1852, 0
        %v1947 = vsel %vm443, %v1853, 0
        %v1950 = vsel %vm443, %v1854, 0
        %v1953 = vsel %vm443, %v1855, 0
        %1955 = vmatprep.subr.mxu0 0.0
        %1956 = vmatpush1.xpose.msra.mxu0 %v1905
        %1957 = vmatprep.subr.mxu0 0.0
        %1958 = vmatpush1.xpose.msra.mxu0 %v1902
        %1959 = vmatprep.subr.mxu0 0.0
        %1960 = vmatpush1.xpose.msra.mxu0 %v1899
        %1961 = vmatprep.subr.mxu0 0.0
        %1962 = vmatpush1.xpose.msra.mxu0 %v1896
        %1963 = vmatprep.subr.mxu0 0.0
        %1964 = vmatpush1.xpose.msra.mxu0 %v1893
        %1965 = vmatprep.subr.mxu0 0.0
        %1966 = vmatpush1.xpose.msra.mxu0 %v1890
        %1967 = vmatprep.subr.mxu0 0.0
        %1968 = vmatpush1.xpose.msra.mxu0 %v1887
        %1969 = vmatprep.subr.mxu0 0.0
        %1970 = vmatpush1.xpose.msra.mxu0 %v1884
        %1971 = vmatprep.subr.mxu0 0.0
        %1972 = vmatpush1.xpose.msra.mxu0 %v1881
        %1973 = vmatprep.subr.mxu0 0.0
        %1974 = vmatpush1.xpose.msra.mxu0 %v1878
        %1975 = vmatprep.subr.mxu0 0.0
        %1976 = vmatpush1.xpose.msra.mxu0 %v1875
        %1977 = vmatprep.subr.mxu0 0.0
        %1978 = vmatpush1.xpose.msra.mxu0 %v1872
        %1979 = vmatprep.subr.mxu0 0.0
        %1980 = vmatpush1.xpose.msra.mxu0 %v1869
        %1981 = vmatprep.subr.mxu0 0.0
        %1982 = vmatpush1.xpose.msra.mxu0 %v1866
        %1983 = vmatprep.subr.mxu0 0.0
        %1984 = vmatpush1.xpose.msra.mxu0 %v1863
        %1985 = vmatprep.subr.mxu0 0.0
        %1986 = vmatpush1.xpose.msra.mxu0 %v1860
        %1987 = vmatprep.subr.mxu0 0.0
        %1988 = vmatpush2.xpose.msra.mxu0 %v1953
        %1989 = vmatprep.subr.mxu0 0.0
        %1990 = vmatpush2.xpose.msra.mxu0 %v1950
        %1991 = vmatprep.subr.mxu0 0.0
        %1992 = vmatpush2.xpose.msra.mxu0 %v1947
        %1993 = vmatprep.subr.mxu0 0.0
        %1994 = vmatpush2.xpose.msra.mxu0 %v1944
        %1995 = vmatprep.subr.mxu0 0.0
        %1996 = vmatpush2.xpose.msra.mxu0 %v1941
        %1997 = vmatprep.subr.mxu0 0.0
        %1998 = vmatpush2.xpose.msra.mxu0 %v1938
        %1999 = vmatprep.subr.mxu0 0.0
        %2000 = vmatpush2.xpose.msra.mxu0 %v1935
        %2001 = vmatprep.subr.mxu0 0.0
        %2002 = vmatpush2.xpose.msra.mxu0 %v1932
        %2003 = vmatprep.subr.mxu0 0.0
        %2004 = vmatpush2.xpose.msra.mxu0 %v1929
        %2005 = vmatprep.subr.mxu0 0.0
        %2006 = vmatpush2.xpose.msra.mxu0 %v1926
        %2007 = vmatprep.subr.mxu0 0.0
        %2008 = vmatpush2.xpose.msra.mxu0 %v1923
        %2009 = vmatprep.subr.mxu0 0.0
        %2010 = vmatpush2.xpose.msra.mxu0 %v1920
        %2011 = vmatprep.subr.mxu0 0.0
        %2012 = vmatpush2.xpose.msra.mxu0 %v1917
        %2013 = vmatprep.subr.mxu0 0.0
        %2014 = vmatpush2.xpose.msra.mxu0 %v1914
        %2015 = vmatprep.subr.mxu0 0.0
        %2016 = vmatpush2.xpose.msra.mxu0 %v1911
        %2017 = vmatprep.subr.mxu0 0.0
        %2018 = vmatpush2.xpose.msra.mxu0 %v1908
        %2019 = vmatprep.mubr.f32.mxu0 0.0
        %2020 = vmatmul.mubr.f32.gmra.mxu0 %v1857
        %v2021 = vpop.f32.mrf.mxu0
        %v2022 = vadd.f32 0.0, %v2021
        %v2023 = vpop.f32.mrf.mxu0
        %v2024 = vadd.f32 0.0, %v2023
        %2025 = vdwg.mxu0
        %v2026 = vadd.f32 %v2022, %v2024
        %v2027 = vrsqrt.pop %v2026
        %v2028 = vmul.f32 %v2026, %v2027
        %vm2029 = vcmp.eq.f32.partialorder %v2026, inf
        %v2030 = vsel %vm2029, %v2026, %v2028
        %vm2031 = vcmp.eq.f32.partialorder %v2026, 0.0
        %v2032 = vand.u32 %v2026, 2147483648
        %v2033 = vsel %vm2031, %v2032, %v2030
        %v2034 = vadd.f32 %v2033, 0.0001
        %v2035 = vrcp.pop %v2034
        %v2036 = vld [vmem:[%s8] sm:$0x1]
        %v2037 = vld [vmem:[#allocation2] sm:$0x1]
        %2039 = vset.pattern.permute.xlu0 0
        %2040 = vperm.xlu0 %2039, %v2037
        %v2041 = vpop.permute.xlu0 %2040
        %v2043 = vlaneseq
        %v2044 = vshrl.u32 %v2043, 7
        %v2045 = vsub.s32 0, %v2044
        %v2046 = vrot.slane %v2041, %v2045
        %2047 = vrot.lane.b32.xlu0 %v637, 64
        %v2048 = vpop.permute.xlu0 %2047
        %2049 = vrot.lane.b32.xlu0 %v638, 64
        %v2050 = vpop.permute.xlu0 %2049
        %2051 = vrot.lane.b32.xlu0 %v639, 64
        %v2052 = vpop.permute.xlu0 %2051
        %2053 = vrot.lane.b32.xlu0 %v640, 64
        %v2054 = vpop.permute.xlu0 %2053
        %2055 = vrot.lane.b32.xlu0 %v641, 64
        %v2056 = vpop.permute.xlu0 %2055
        %2057 = vrot.lane.b32.xlu0 %v642, 64
        %v2058 = vpop.permute.xlu0 %2057
        %2059 = vrot.lane.b32.xlu0 %v643, 64
        %v2060 = vpop.permute.xlu0 %2059
        %2061 = vrot.lane.b32.xlu0 %v644, 64
        %v2062 = vpop.permute.xlu0 %2061
        %2063 = vrot.lane.b32.xlu0 %v645, 64
        %v2064 = vpop.permute.xlu0 %2063
        %2065 = vrot.lane.b32.xlu0 %v646, 64
        %v2066 = vpop.permute.xlu0 %2065
        %2067 = vrot.lane.b32.xlu0 %v647, 64
        %v2068 = vpop.permute.xlu0 %2067
        %2069 = vrot.lane.b32.xlu0 %v648, 64
        %v2070 = vpop.permute.xlu0 %2069
        %2071 = vrot.lane.b32.xlu0 %v649, 64
        %v2072 = vpop.permute.xlu0 %2071
        %2073 = vrot.lane.b32.xlu0 %v650, 64
        %v2074 = vpop.permute.xlu0 %2073
        %2075 = vrot.lane.b32.xlu0 %v651, 64
        %v2076 = vpop.permute.xlu0 %2075
        %2077 = vrot.lane.b32.xlu0 %v652, 64
        %v2078 = vpop.permute.xlu0 %2077
        %v2080 = vsel %vm700, %v2036, 0
        %v2082 = vsel %vm700, %v2048, 0
        %v2084 = vsel %vm700, %v2050, 0
        %v2086 = vsel %vm700, %v2052, 0
        %v2088 = vsel %vm700, %v2054, 0
        %v2090 = vsel %vm700, %v2056, 0
        %v2092 = vsel %vm700, %v2058, 0
        %v2094 = vsel %vm700, %v2060, 0
        %v2096 = vsel %vm700, %v2062, 0
        %v2098 = vsel %vm700, %v2064, 0
        %v2100 = vsel %vm700, %v2066, 0
        %v2102 = vsel %vm700, %v2068, 0
        %v2104 = vsel %vm700, %v2070, 0
        %v2106 = vsel %vm700, %v2072, 0
        %v2108 = vsel %vm700, %v2074, 0
        %v2110 = vsel %vm700, %v2076, 0
        %v2112 = vsel %vm700, %v2078, 0
        %2114 = vmatprep.subr.mxu0 0.0
        %2115 = vmatpush1.xpose.msra.mxu0 %v2112
        %2116 = vmatprep.subr.mxu0 0.0
        %2117 = vmatpush1.xpose.msra.mxu0 %v2110
        %2118 = vmatprep.subr.mxu0 0.0
        %2119 = vmatpush1.xpose.msra.mxu0 %v2108
        %2120 = vmatprep.subr.mxu0 0.0
        %2121 = vmatpush1.xpose.msra.mxu0 %v2106
        %2122 = vmatprep.subr.mxu0 0.0
        %2123 = vmatpush1.xpose.msra.mxu0 %v2104
        %2124 = vmatprep.subr.mxu0 0.0
        %2125 = vmatpush1.xpose.msra.mxu0 %v2102
        %2126 = vmatprep.subr.mxu0 0.0
        %2127 = vmatpush1.xpose.msra.mxu0 %v2100
        %2128 = vmatprep.subr.mxu0 0.0
        %2129 = vmatpush1.xpose.msra.mxu0 %v2098
        %2130 = vmatprep.subr.mxu0 0.0
        %2131 = vmatpush1.xpose.msra.mxu0 %v2096
        %2132 = vmatprep.subr.mxu0 0.0
        %2133 = vmatpush1.xpose.msra.mxu0 %v2094
        %2134 = vmatprep.subr.mxu0 0.0
        %2135 = vmatpush1.xpose.msra.mxu0 %v2092
        %2136 = vmatprep.subr.mxu0 0.0
        %2137 = vmatpush1.xpose.msra.mxu0 %v2090
        %2138 = vmatprep.subr.mxu0 0.0
        %2139 = vmatpush1.xpose.msra.mxu0 %v2088
        %2140 = vmatprep.subr.mxu0 0.0
        %2141 = vmatpush1.xpose.msra.mxu0 %v2086
        %2142 = vmatprep.subr.mxu0 0.0
        %2143 = vmatpush1.xpose.msra.mxu0 %v2084
        %2144 = vmatprep.subr.mxu0 0.0
        %2145 = vmatpush1.xpose.msra.mxu0 %v2082
        %2146 = vmatprep.subr.mxu0 0.0
        %2147 = vmatpush2.xpose.msra.mxu0 0.0
        %2148 = vmatprep.subr.mxu0 0.0
        %2149 = vmatpush2.xpose.msra.mxu0 0.0
        %2150 = vmatprep.subr.mxu0 0.0
        %2151 = vmatpush2.xpose.msra.mxu0 0.0
        %2152 = vmatprep.subr.mxu0 0.0
        %2153 = vmatpush2.xpose.msra.mxu0 0.0
        %2154 = vmatprep.subr.mxu0 0.0
        %2155 = vmatpush2.xpose.msra.mxu0 0.0
        %2156 = vmatprep.subr.mxu0 0.0
        %2157 = vmatpush2.xpose.msra.mxu0 0.0
        %2158 = vmatprep.subr.mxu0 0.0
        %2159 = vmatpush2.xpose.msra.mxu0 0.0
        %2160 = vmatprep.subr.mxu0 0.0
        %2161 = vmatpush2.xpose.msra.mxu0 0.0
        %2162 = vmatprep.subr.mxu0 0.0
        %2163 = vmatpush2.xpose.msra.mxu0 0.0
        %2164 = vmatprep.subr.mxu0 0.0
        %2165 = vmatpush2.xpose.msra.mxu0 0.0
        %2166 = vmatprep.subr.mxu0 0.0
        %2167 = vmatpush2.xpose.msra.mxu0 0.0
        %2168 = vmatprep.subr.mxu0 0.0
        %2169 = vmatpush2.xpose.msra.mxu0 0.0
        %2170 = vmatprep.subr.mxu0 0.0
        %2171 = vmatpush2.xpose.msra.mxu0 0.0
        %2172 = vmatprep.subr.mxu0 0.0
        %2173 = vmatpush2.xpose.msra.mxu0 0.0
        %2174 = vmatprep.subr.mxu0 0.0
        %2175 = vmatpush2.xpose.msra.mxu0 0.0
        %2176 = vmatprep.subr.mxu0 0.0
        %2177 = vmatpush2.xpose.msra.mxu0 0.0
        %2178 = vmatprep.mubr.f32.mxu0 0.0
        %2179 = vmatmul.mubr.f32.gmra.mxu0 %v2080
        %v2180 = vpop.f32.mrf.mxu0
        %v2181 = vadd.f32 %v2046, %v2180
        %v2182 = vpop.f32.mrf.mxu0
        %2183 = vdwg.mxu0
        %v2184 = vmax.f32 %v2181, 0.0
        %v2185 = vand.u32 2147483647, %v2181
        %v2186 = vsub.f32 0.0, %v2185
        %v2187 = vmul.f32 %v2186, 1.442695
        %v2188 = vpow.pop %v2187
        %v2189 = vadd.f32 %v2188, 1.0
        %v2190 = vlog2.pop %v2189
        %v2191 = vmul.f32 %v2190, 0.6931472
        %v2192 = vmul.f32 -0.5, %v2188
        %v2193 = vadd.f32 %v2192, 1.0
        %v2194 = vmul.f32 %v2193, %v2188
        %v2195 = vand.u32 2147483647, %v2188
        %vm2196 = vcmp.lt.f32.partialorder %v2195, 0.0004427343
        %v2197 = vsel %vm2196, %v2194, %v2191
        %v2198 = vadd.f32 %v2184, %v2197
        %v2199 = vmul.f32 %v2198, %v2035
        %v2200 = vlaneseq
        %v2201 = vshrl.u32 %v2200, 7
        %v2202 = vsub.s32 0, %v2201
        %v2203 = vrot.slane %v2199, %v2202
        %v2204 = vmul.f32 %v1067, %v2203
        %v2205 = vld [vmem:[%s10] sm:$0x3]
        %v2206 = vtanh.pop %v2204
        %2208 = vset.pattern.permute.xlu0 0
        %2209 = vperm.xlu0 %2208, %v2205
        %v2210 = vpop.permute.xlu0 %2209
        %v2212 = vmul.f32 %v2210, %v2206
        %v2213 = vld [vmem:[%s11] sm:$0x3]
        %2215 = vset.pattern.permute.xlu0 0
        %2216 = vperm.xlu0 %2215, %v2213
        %v2217 = vpop.permute.xlu0 %2216
        %v2219 = vadd.f32 %v2212, %v2217
        %2220 = vst [vmem:[%s409] sm:$0x3] %v2219
        %s2221 = sand.u32 %s293, 1
        %s2222 = scalar_lea.sflag [#allocation4], %s2221
        %s2223 = sand.u32 %s293, 1
        %s2224 = smul.addr %s2223, 2
        %s2225 = scalar_lea.vmem [#allocation3], %s2224
        // Predicated region
        $region69: #{tpu_custom_call.1} parent=67 // pred_check
          %p2226 = pneg %p303
        $region70: #{tpu_custom_call.1} parent=67 // pred_check_branch
          %2228 = sbr.rel (%p2226) target = $region72
        $region71: #{tpu_custom_call.1} parent=67 // pred_region
          %s2230 = ssub.s32 32, 32
          %2231 = vsyncadd %s2222, %s2230
          %s2232 = smul.addr %s28, 32
          %s2233 = scalar_lea.hbm %s12, %s2232
          %s2235 = sshll.u32 %s2225, 4
          %s2236 = int_to_ptr.vmem [resolvable:$true] %s2235
          %2238 = dma.vmem_to_hbm [thread:$0]  %s2236, 32, %s2233, %s2222
        $region72: #{tpu_custom_call.1} parent=67 // pred_fallthru
          _
      $region68: #{tpu_custom_call.1} parent=5 // pred_fallthru
        _
      %p2239 = scmp.le.s32.totalorder 2, %s23
      // Predicated region
      $region73: #{tpu_custom_call.1} parent=5 // pred_check
        %p2240 = pneg %p2239
      $region74: #{tpu_custom_call.1} parent=5 // pred_check_branch
        %2242 = sbr.rel (%p2240) target = $region76
      $region75: #{tpu_custom_call.1} parent=5 // pred_region
        %s2243 = ssub.s32 %s23, 2
        // Predicated region
        $region77: #{tpu_custom_call.1} parent=75 // pred_check
          %p2244 = pneg %p309
        $region78: #{tpu_custom_call.1} parent=75 // pred_check_branch
          %2246 = sbr.rel (%p2244) target = $region80
        $region79: #{tpu_custom_call.1} parent=75 // pred_region
          %s2247 = sand.u32 %s294, 1
          %s2248 = scalar_lea.sflag [#allocation4], %s2247
          %s2249 = sand.u32 %s294, 1
          %s2250 = smul.addr %s2249, 2
          %s2251 = scalar_lea.vmem [#allocation3], %s2250
          %2252 = dma.done %s2248, 32
        $region80: #{tpu_custom_call.1} parent=75 // pred_fallthru
          _
      $region76: #{tpu_custom_call.1} parent=5 // pred_fallthru
        _
    $region6: #{tpu_custom_call.1} parent=1 // loop_footer
      %s27 = sadd.s32 1, %s23
    $region7: #{tpu_custom_call.1} parent=1 // loop_footer_branch
      %22 = sbr.rel target = $region3
    $region8: #{tpu_custom_call.1} parent=1 // loop_exit
      _
    %2253 = vsyncpa [#allocation4], 1
    %s2254 = scalar_lea.sflag [#allocation4], 1
    %2255 = vsyncpa %s2254, 1

</llo_original>
